<compile_context>
chip_gen: v7x
topology: tpu7x:2x2x1
jax: 0.10.0
libtpu: 0.0.40
codegen_flags: <defaults>
</compile_context>

<pallas_src>
import jax
import jax.numpy as jnp
from jax.experimental import pallas as pl
from jax.experimental.pallas import tpu as pltpu


def _round_up(n, mult):
    return ((n + mult - 1) // mult) * mult


def _n_active_modules(t, num_modules):
    # clock-gated module count from MultiScaleLMNCell.forward
    mam = 0
    while t % (2 ** mam) == 0 and mam < num_modules:
        mam += 1
    return mam


def _module_mask(memory_size, num_modules, max_modules):
    # m_mask from MultiScaleLMNCell._update_mask
    Mmax = memory_size * max_modules
    mask = jnp.zeros((Mmax, Mmax), jnp.float32)
    for mi in range(num_modules):
        mask = mask.at[mi * memory_size:(mi + 1) * memory_size,
                       mi * memory_size:].set(1.0)
    return mask


def _mslmn_kernel(active_ref,  # SMEM (Tpad,) int32: # active memory cols at step t
                  xh_ref,      # (TB, bt, Hp) f32  = x @ Wxh + bh (precomputed)
                  m0_ref,      # (bt, Mp) f32, padded initial state
                  wfus_ref,    # (Mp, Hp+Mp) bf16 = [Wmh[:, :M].T | (Wmm*mask).T]
                  whmT_ref,    # (Hp, Mp) bf16    = Whm[:M, :].T (padded)
                  bm_ref,      # (1, Mp) f32
                  out_ref,     # (TB, bt, Mp) per-step output (== m_t, alt_mode=False)
                  mfin_ref):   # (bt, Mp) f32, output-resident recurrence carry
    t_blk = pl.program_id(1)
    TB = out_ref.shape[0]
    Hp = whmT_ref.shape[0]

    @pl.when(t_blk == 0)
    def _():
        mfin_ref[...] = m0_ref[...]

    # Hoisted loop invariant (JAX does not CSE iota inside the loop).
    col = jax.lax.broadcasted_iota(jnp.int32, mfin_ref.shape, dimension=1)

    m = mfin_ref[...]                                  # f32 carry
    for i in range(TB):                                # statically unrolled, TB small
        t = t_blk * TB + i
        # Fused m_prev dot: [h-part | m-part] = m_prev @ [Wmh^T | Wmm^T]
        # bf16 operands, f32 accumulation; weight ref read at use site.
        mm = jnp.dot(m.astype(wfus_ref.dtype), wfus_ref[...],
                     preferred_element_type=jnp.float32)
        h_t = jnp.tanh(xh_ref[i] + mm[:, :Hp])         # elementwise stays f32
        # Dot result first so the adds can fold into the MXU result path (v7x MRB).
        upd = (jnp.dot(h_t.astype(whmT_ref.dtype), whmT_ref[...],
                       preferred_element_type=jnp.float32)
               + mm[:, Hp:] + bm_ref[...])
        # Clock gate: only the first `n_active` memory columns are updated; the rest
        # (including zero padding; n_active = 0 for padded timesteps) keep their value.
        # TODO(synk): for memory_size >= 128 and large B, replace the full-width
        # where-gate with per-module column slabs gated by pl.when on the schedule.
        n_active = active_ref[t]
        m = jnp.where(col < n_active, upd, m)
        out_ref[i] = m.astype(out_ref.dtype)

    mfin_ref[...] = m


def mslmn_forward(x, m0, params, memory_size, num_modules, max_modules=None,
                  time_block=16, batch_block=None, weight_dtype=jnp.bfloat16):
    """Pallas implementation of MultiScaleLMN.forward (alt_mode=False)."""
    if max_modules is None:
        max_modules = num_modules
    T, B, I = x.shape
    assert T > 0
    M = memory_size * num_modules
    H = params["Wxh"].shape[1]

    # Lane / sublane-dense padded sizes (compute semantics unchanged).
    Hp = _round_up(H, 128)
    Mp = _round_up(M, 128)
    Bp = _round_up(B, 16)            # 16-sublane tile covers bf16 packing of the LHS
    if batch_block is None:
        # >= 2 batch tiles keeps both v7x TensorCores busy when the batch allows it.
        bt = Bp // 2 if (Bp % 32 == 0) else Bp
    else:
        bt = _round_up(batch_block, 16)
        Bp = _round_up(Bp, bt)
    nb = Bp // bt

    w_isz = jnp.dtype(weight_dtype).itemsize
    out_isz = jnp.dtype(x.dtype).itemsize

    # VMEM budget: double-buffered xh/out blocks + single-buffered weight slabs.
    def vmem_bytes(tb):
        xh_blk = 2 * tb * bt * Hp * 4
        out_blk = 2 * tb * bt * Mp * out_isz
        weights = (Mp * (Hp + Mp) + Hp * Mp) * w_isz    # Buffered(1) -> x1
        state = 3 * bt * Mp * 4 + Mp * 4                # m0 (x2) + mfin + bm
        return xh_blk + out_blk + weights + state

    TB = max(1, min(time_block, T))
    while TB > 1 and vmem_bytes(TB) > (48 << 20):        # headroom under v7x 64 MiB
        TB //= 2
    Tpad = _round_up(T, TB)
    nt = Tpad // TB
    vmem_limit = int(min(max(2 * vmem_bytes(TB) + (2 << 20), 32 << 20), 56 << 20))

    # Clock schedule (depends only on t) -> scalar prefetch into SMEM.
    # Padded timesteps get 0 active columns so the carried state is untouched.
    active = jnp.array(
        [memory_size * _n_active_modules(t, num_modules) for t in range(T)]
        + [0] * (Tpad - T), dtype=jnp.int32)

    def pad2(a, r, c):
        return jnp.pad(a, ((0, r - a.shape[0]), (0, c - a.shape[1])))

    # Whole-sequence input projection as ONE wrapper matmul (removes the tiny-K,
    # lane-sparse x path and the in-kernel reshape from the serial recurrence).
    xh = (x.reshape(T * B, I).astype(jnp.float32) @ params["Wxh"].astype(jnp.float32)
          + params["bh"].astype(jnp.float32)).reshape(T, B, H)
    xh = jnp.pad(xh, ((0, Tpad - T), (0, Bp - B), (0, Hp - H)))

    # Weight slabs: mask Wmm (as the PyTorch forward does), slice active views,
    # transpose, zero-pad to lane multiples, fuse the two m_prev-fed slabs, cast to
    # bf16 (f32 accumulation is kept in-kernel via preferred_element_type).
    mask = _module_mask(memory_size, num_modules, max_modules)
    wmm_masked = params["Wmm"] * mask
    wmhT = pad2(params["Wmh"][:, :M].T, Mp, Hp)                     # (Mp, Hp)
    wmmT = pad2(wmm_masked[:M, :M].T, Mp, Mp)                       # (Mp, Mp)
    w_fused = jnp.concatenate([wmhT, wmmT], axis=1).astype(weight_dtype)
    whmT = pad2(params["Whm"][:M, :].T, Hp, Mp).astype(weight_dtype)
    bm = pad2(params["bm"][:M].reshape(1, M).astype(jnp.float32), 1, Mp)
    m0p = pad2(m0.astype(jnp.float32), Bp, Mp)

    inv = dict(pipeline_mode=pl.Buffered(1))   # grid-invariant: no double-buffering

    grid_spec = pltpu.PrefetchScalarGridSpec(
        num_scalar_prefetch=1,
        grid=(nb, nt),
        in_specs=[
            pl.BlockSpec((TB, bt, Hp), lambda b, t, a: (t, b, 0)),
            pl.BlockSpec((bt, Mp), lambda b, t, a: (b, 0)),
            pl.BlockSpec((Mp, Hp + Mp), lambda b, t, a: (0, 0), **inv),
            pl.BlockSpec((Hp, Mp), lambda b, t, a: (0, 0), **inv),
            pl.BlockSpec((1, Mp), lambda b, t, a: (0, 0), **inv),
        ],
        out_specs=[
            pl.BlockSpec((TB, bt, Mp), lambda b, t, a: (t, b, 0)),
            pl.BlockSpec((bt, Mp), lambda b, t, a: (b, 0)),
        ],
    )

    out_p, mfin_p = pl.pallas_call(
        _mslmn_kernel,
        grid_spec=grid_spec,
        out_shape=(jax.ShapeDtypeStruct((Tpad, Bp, Mp), x.dtype),
                   jax.ShapeDtypeStruct((Bp, Mp), jnp.float32)),
        compiler_params=pltpu.CompilerParams(
            dimension_semantics=("parallel", "arbitrary"),  # time is serial
            vmem_limit_bytes=vmem_limit),
    )(active, xh, m0p, w_fused, whmT, bm)

    return out_p[:T, :B, :M], mfin_p[:B, :M].astype(x.dtype)


def mslmn_reference(x, m0, params, memory_size, num_modules, max_modules=None):
    """Pure-JAX f32 mirror of the PyTorch forward, for correctness checking."""
    if max_modules is None:
        max_modules = num_modules
    T, B, I = x.shape
    M = memory_size * num_modules
    mask = _module_mask(memory_size, num_modules, max_modules)
    Wmm = params["Wmm"] * mask
    Wxh, Wmh, Whm = params["Wxh"], params["Wmh"], params["Whm"]
    bh, bm = params["bh"], params["bm"]
    m_prev = m0
    outs = []
    for t in range(T):
        a = memory_size * _n_active_modules(t, num_modules)
        h_t = jnp.tanh(x[t] @ Wxh + m_prev @ Wmh[:, :M].T + bh)
        upd = m_prev @ Wmm[:a, :M].T + h_t @ Whm[:a, :].T + bm[:a]
        m_t = jnp.concatenate([upd, m_prev[:, a:]], axis=1)
        outs.append(m_t)
        m_prev = m_t
    return jnp.stack(outs), m_prev


if __name__ == "__main__":
    # small shapes consistent with the module's forward
    input_size, hidden_size, memory_size, num_modules = 16, 32, 8, 4
    T, B = 8, 2
    M = memory_size * num_modules  # 32

    key = jax.random.PRNGKey(0)
    ks = jax.random.split(key, 8)

    def _init(k, shape, fan_in, scale=1.0):
        return scale * jax.random.normal(k, shape, jnp.float32) / jnp.sqrt(float(fan_in))

    # deterministic parameter init (stands in for standard_init); Wmm scaled down to
    # keep the length-T recurrence well-conditioned for the numerical comparison.
    params = {
        "Wxh": _init(ks[0], (input_size, hidden_size), input_size),
        "Whm": _init(ks[1], (M, hidden_size), hidden_size),
        "Wmm": _init(ks[2], (M, M), M, scale=0.5),
        "Wmh": _init(ks[3], (hidden_size, M), M),
        "bh": 0.1 * jax.random.normal(ks[4], (hidden_size,), jnp.float32),
        "bm": 0.1 * jax.random.normal(ks[5], (M,), jnp.float32),
    }

    x = jax.random.normal(ks[6], (T, B, input_size), jnp.float32)
    m0 = 0.1 * jax.random.normal(ks[7], (B, M), jnp.float32)

    out, m_fin = mslmn_forward(x, m0, params, memory_size, num_modules)
    out = jax.block_until_ready(out)
    m_fin = jax.block_until_ready(m_fin)

    out_ref, m_ref = mslmn_reference(x, m0, params, memory_size, num_modules)
    assert out.shape == (T, B, M) and m_fin.shape == (B, M)
    # bf16 matmul operands (f32 accumulation) compound slightly over the recurrence.
    assert jnp.allclose(out, out_ref, atol=2e-2, rtol=2e-2), \
        float(jnp.max(jnp.abs(out - out_ref)))
    assert jnp.allclose(m_fin, m_ref, atol=2e-2, rtol=2e-2)

    print("KERNEL_OK")
</pallas_src>

<mosaic_0001>
module attributes {stable_mosaic.version = 11 : i64} {
  func.func @_mslmn_kernel(%arg0: i32, %arg1: i32, %arg2: memref<8xi32, #tpu.memory_space<smem>>, %arg3: memref<8x16x128xf32, #tpu.memory_space<vmem>>, %arg4: memref<16x128xf32, #tpu.memory_space<vmem>>, %arg5: memref<128x256xbf16, #tpu.memory_space<vmem>>, %arg6: memref<128x128xbf16, #tpu.memory_space<vmem>>, %arg7: memref<1x128xf32, #tpu.memory_space<vmem>>, %arg8: memref<8x16x128xf32, #tpu.memory_space<vmem>>, %arg9: memref<16x128xf32, #tpu.memory_space<vmem>>) attributes {dimension_semantics = [#tpu.dimension_semantics<parallel>, #tpu.dimension_semantics<arbitrary>], iteration_bounds = array<i64: 1, 1>, scalar_prefetch = 1 : i64, scratch_operands = 0 : i64, tpu.core_type = #tpu.core_type<tc>, window_params = [{transform_indices = @transform_0, window_bounds = array<i64: 8, 16, 128>}, {transform_indices = @transform_1, window_bounds = array<i64: 16, 128>}, {pipeline_mode = #tpu.pipeline_mode<synchronous>, transform_indices = @transform_2, window_bounds = array<i64: 128, 256>}, {pipeline_mode = #tpu.pipeline_mode<synchronous>, transform_indices = @transform_3, window_bounds = array<i64: 128, 128>}, {pipeline_mode = #tpu.pipeline_mode<synchronous>, transform_indices = @transform_4, window_bounds = array<i64: 1, 128>}, {transform_indices = @transform_5, window_bounds = array<i64: 8, 16, 128>}, {transform_indices = @transform_6, window_bounds = array<i64: 16, 128>}]} {
    %c0_i32 = arith.constant 0 : i32
    %0 = arith.cmpi eq, %arg1, %c0_i32 : i32
    %1 = arith.extui %0 : i1 to i32
    %c0_i32_0 = arith.constant 0 : i32
    %2 = arith.cmpi ne, %1, %c0_i32_0 : i32
    scf.if %2 {
      %c0_116 = arith.constant 0 : index
      %c0_117 = arith.constant 0 : index
      %214 = vector.load %arg4[%c0_116, %c0_117] : memref<16x128xf32, #tpu.memory_space<vmem>>, vector<16x128xf32>
      %c0_118 = arith.constant 0 : index
      %c0_119 = arith.constant 0 : index
      %215 = vector.load %arg9[%c0_118, %c0_119] : memref<16x128xf32, #tpu.memory_space<vmem>>, vector<16x128xf32>
      tpu.vector_store %arg9[%c0_118, %c0_119], %214 {strides = array<i32>} : memref<16x128xf32, #tpu.memory_space<vmem>>, vector<16x128xf32>,
    } else {
    }
    %3 = tpu.iota {dimensions = array<i32: 1>} : vector<16x128xi32>
    %c0 = arith.constant 0 : index
    %c0_1 = arith.constant 0 : index
    %4 = vector.load %arg9[%c0, %c0_1] : memref<16x128xf32, #tpu.memory_space<vmem>>, vector<16x128xf32>
    %c8_i32 = arith.constant 8 : i32
    %5 = arith.muli %arg1, %c8_i32 : i32
    %c0_i32_2 = arith.constant 0 : i32
    %6 = arith.addi %5, %c0_i32_2 : i32
    %7 = arith.truncf %4 : vector<16x128xf32> to vector<16x128xbf16>
    %c0_3 = arith.constant 0 : index
    %c0_4 = arith.constant 0 : index
    %8 = vector.load %arg5[%c0_3, %c0_4] : memref<128x256xbf16, #tpu.memory_space<vmem>>, vector<128x256xbf16>
    %cst = arith.constant dense<0.000000e+00> : vector<16x256xf32>
    %9 = tpu.matmul %7, %8, %cst {dimension_numbers = #tpu.dot_dimension_numbers<[1], [0], [0], [1], [0, 0, 1, 1], [], []>} : vector<16x128xbf16>, vector<128x256xbf16>, vector<16x256xf32> -> vector<16x256xf32>
    %c0_5 = arith.constant 0 : index
    %c0_6 = arith.constant 0 : index
    %c0_7 = arith.constant 0 : index
    %10 = vector.load %arg3[%c0_5, %c0_6, %c0_7] : memref<8x16x128xf32, #tpu.memory_space<vmem>>, vector<1x16x128xf32>
    %11 = vector.shape_cast %10 : vector<1x16x128xf32> to vector<16x128xf32>
    %12 = vector.extract_strided_slice %9 {offsets = [0, 0], sizes = [16, 128], strides = [1, 1]} : vector<16x256xf32> to vector<16x128xf32>
    %13 = arith.addf %11, %12 : vector<16x128xf32>
    %14 = math.tanh %13 : vector<16x128xf32>
    %15 = arith.truncf %14 : vector<16x128xf32> to vector<16x128xbf16>
    %c0_8 = arith.constant 0 : index
    %c0_9 = arith.constant 0 : index
    %16 = vector.load %arg6[%c0_8, %c0_9] : memref<128x128xbf16, #tpu.memory_space<vmem>>, vector<128x128xbf16>
    %cst_10 = arith.constant dense<0.000000e+00> : vector<16x128xf32>
    %17 = tpu.matmul %15, %16, %cst_10 {dimension_numbers = #tpu.dot_dimension_numbers<[1], [0], [0], [1], [0, 0, 1, 1], [], []>} : vector<16x128xbf16>, vector<128x128xbf16>, vector<16x128xf32> -> vector<16x128xf32>
    %18 = vector.extract_strided_slice %9 {offsets = [0, 128], sizes = [16, 128], strides = [1, 1]} : vector<16x256xf32> to vector<16x128xf32>
    %19 = arith.addf %17, %18 : vector<16x128xf32>
    %c0_11 = arith.constant 0 : index
    %c0_12 = arith.constant 0 : index
    %20 = vector.load %arg7[%c0_11, %c0_12] : memref<1x128xf32, #tpu.memory_space<vmem>>, vector<1x128xf32>
    %21 = vector.broadcast %20 : vector<1x128xf32> to vector<16x128xf32>
    %22 = arith.addf %19, %21 : vector<16x128xf32>
    %23 = arith.index_cast %6 : i32 to index
    %24 = memref.load %arg2[%23] : memref<8xi32, #tpu.memory_space<smem>>
    %25 = vector.broadcast %24 : i32 to vector<16x128xi32>
    %26 = arith.cmpi slt, %3, %25 : vector<16x128xi32>
    %27 = arith.select %26, %22, %4 : vector<16x128xi1>, vector<16x128xf32>
    %c0_13 = arith.constant 0 : index
    %c0_14 = arith.constant 0 : index
    %c0_15 = arith.constant 0 : index
    %28 = vector.load %arg8[%c0_13, %c0_14, %c0_15] : memref<8x16x128xf32, #tpu.memory_space<vmem>>, vector<1x16x128xf32>
    %29 = vector.shape_cast %28 : vector<1x16x128xf32> to vector<16x128xf32>
    %30 = vector.shape_cast %27 : vector<16x128xf32> to vector<1x16x128xf32>
    tpu.vector_store %arg8[%c0_13, %c0_14, %c0_15], %30 {strides = array<i32>} : memref<8x16x128xf32, #tpu.memory_space<vmem>>, vector<1x16x128xf32>,
    %c8_i32_16 = arith.constant 8 : i32
    %31 = arith.muli %arg1, %c8_i32_16 : i32
    %c1_i32 = arith.constant 1 : i32
    %32 = arith.addi %31, %c1_i32 : i32
    %33 = arith.truncf %27 : vector<16x128xf32> to vector<16x128xbf16>
    %c0_17 = arith.constant 0 : index
    %c0_18 = arith.constant 0 : index
    %34 = vector.load %arg5[%c0_17, %c0_18] : memref<128x256xbf16, #tpu.memory_space<vmem>>, vector<128x256xbf16>
    %cst_19 = arith.constant dense<0.000000e+00> : vector<16x256xf32>
    %35 = tpu.matmul %33, %34, %cst_19 {dimension_numbers = #tpu.dot_dimension_numbers<[1], [0], [0], [1], [0, 0, 1, 1], [], []>} : vector<16x128xbf16>, vector<128x256xbf16>, vector<16x256xf32> -> vector<16x256xf32>
    %c1 = arith.constant 1 : index
    %c0_20 = arith.constant 0 : index
    %c0_21 = arith.constant 0 : index
    %36 = vector.load %arg3[%c1, %c0_20, %c0_21] : memref<8x16x128xf32, #tpu.memory_space<vmem>>, vector<1x16x128xf32>
    %37 = vector.shape_cast %36 : vector<1x16x128xf32> to vector<16x128xf32>
    %38 = vector.extract_strided_slice %35 {offsets = [0, 0], sizes = [16, 128], strides = [1, 1]} : vector<16x256xf32> to vector<16x128xf32>
    %39 = arith.addf %37, %38 : vector<16x128xf32>
    %40 = math.tanh %39 : vector<16x128xf32>
    %41 = arith.truncf %40 : vector<16x128xf32> to vector<16x128xbf16>
    %c0_22 = arith.constant 0 : index
    %c0_23 = arith.constant 0 : index
    %42 = vector.load %arg6[%c0_22, %c0_23] : memref<128x128xbf16, #tpu.memory_space<vmem>>, vector<128x128xbf16>
    %cst_24 = arith.constant dense<0.000000e+00> : vector<16x128xf32>
    %43 = tpu.matmul %41, %42, %cst_24 {dimension_numbers = #tpu.dot_dimension_numbers<[1], [0], [0], [1], [0, 0, 1, 1], [], []>} : vector<16x128xbf16>, vector<128x128xbf16>, vector<16x128xf32> -> vector<16x128xf32>
    %44 = vector.extract_strided_slice %35 {offsets = [0, 128], sizes = [16, 128], strides = [1, 1]} : vector<16x256xf32> to vector<16x128xf32>
    %45 = arith.addf %43, %44 : vector<16x128xf32>
    %c0_25 = arith.constant 0 : index
    %c0_26 = arith.constant 0 : index
    %46 = vector.load %arg7[%c0_25, %c0_26] : memref<1x128xf32, #tpu.memory_space<vmem>>, vector<1x128xf32>
    %47 = vector.broadcast %46 : vector<1x128xf32> to vector<16x128xf32>
    %48 = arith.addf %45, %47 : vector<16x128xf32>
    %49 = arith.index_cast %32 : i32 to index
    %50 = memref.load %arg2[%49] : memref<8xi32, #tpu.memory_space<smem>>
    %51 = vector.broadcast %50 : i32 to vector<16x128xi32>
    %52 = arith.cmpi slt, %3, %51 : vector<16x128xi32>
    %53 = arith.select %52, %48, %27 : vector<16x128xi1>, vector<16x128xf32>
    %c1_27 = arith.constant 1 : index
    %c0_28 = arith.constant 0 : index
    %c0_29 = arith.constant 0 : index
    %54 = vector.load %arg8[%c1_27, %c0_28, %c0_29] : memref<8x16x128xf32, #tpu.memory_space<vmem>>, vector<1x16x128xf32>
    %55 = vector.shape_cast %54 : vector<1x16x128xf32> to vector<16x128xf32>
    %56 = vector.shape_cast %53 : vector<16x128xf32> to vector<1x16x128xf32>
    tpu.vector_store %arg8[%c1_27, %c0_28, %c0_29], %56 {strides = array<i32>} : memref<8x16x128xf32, #tpu.memory_space<vmem>>, vector<1x16x128xf32>,
    %c8_i32_30 = arith.constant 8 : i32
    %57 = arith.muli %arg1, %c8_i32_30 : i32
    %c2_i32 = arith.constant 2 : i32
    %58 = arith.addi %57, %c2_i32 : i32
    %59 = arith.truncf %53 : vector<16x128xf32> to vector<16x128xbf16>
    %c0_31 = arith.constant 0 : index
    %c0_32 = arith.constant 0 : index
    %60 = vector.load %arg5[%c0_31, %c0_32] : memref<128x256xbf16, #tpu.memory_space<vmem>>, vector<128x256xbf16>
    %cst_33 = arith.constant dense<0.000000e+00> : vector<16x256xf32>
    %61 = tpu.matmul %59, %60, %cst_33 {dimension_numbers = #tpu.dot_dimension_numbers<[1], [0], [0], [1], [0, 0, 1, 1], [], []>} : vector<16x128xbf16>, vector<128x256xbf16>, vector<16x256xf32> -> vector<16x256xf32>
    %c2 = arith.constant 2 : index
    %c0_34 = arith.constant 0 : index
    %c0_35 = arith.constant 0 : index
    %62 = vector.load %arg3[%c2, %c0_34, %c0_35] : memref<8x16x128xf32, #tpu.memory_space<vmem>>, vector<1x16x128xf32>
    %63 = vector.shape_cast %62 : vector<1x16x128xf32> to vector<16x128xf32>
    %64 = vector.extract_strided_slice %61 {offsets = [0, 0], sizes = [16, 128], strides = [1, 1]} : vector<16x256xf32> to vector<16x128xf32>
    %65 = arith.addf %63, %64 : vector<16x128xf32>
    %66 = math.tanh %65 : vector<16x128xf32>
    %67 = arith.truncf %66 : vector<16x128xf32> to vector<16x128xbf16>
    %c0_36 = arith.constant 0 : index
    %c0_37 = arith.constant 0 : index
    %68 = vector.load %arg6[%c0_36, %c0_37] : memref<128x128xbf16, #tpu.memory_space<vmem>>, vector<128x128xbf16>
    %cst_38 = arith.constant dense<0.000000e+00> : vector<16x128xf32>
    %69 = tpu.matmul %67, %68, %cst_38 {dimension_numbers = #tpu.dot_dimension_numbers<[1], [0], [0], [1], [0, 0, 1, 1], [], []>} : vector<16x128xbf16>, vector<128x128xbf16>, vector<16x128xf32> -> vector<16x128xf32>
    %70 = vector.extract_strided_slice %61 {offsets = [0, 128], sizes = [16, 128], strides = [1, 1]} : vector<16x256xf32> to vector<16x128xf32>
    %71 = arith.addf %69, %70 : vector<16x128xf32>
    %c0_39 = arith.constant 0 : index
    %c0_40 = arith.constant 0 : index
    %72 = vector.load %arg7[%c0_39, %c0_40] : memref<1x128xf32, #tpu.memory_space<vmem>>, vector<1x128xf32>
    %73 = vector.broadcast %72 : vector<1x128xf32> to vector<16x128xf32>
    %74 = arith.addf %71, %73 : vector<16x128xf32>
    %75 = arith.index_cast %58 : i32 to index
    %76 = memref.load %arg2[%75] : memref<8xi32, #tpu.memory_space<smem>>
    %77 = vector.broadcast %76 : i32 to vector<16x128xi32>
    %78 = arith.cmpi slt, %3, %77 : vector<16x128xi32>
    %79 = arith.select %78, %74, %53 : vector<16x128xi1>, vector<16x128xf32>
    %c2_41 = arith.constant 2 : index
    %c0_42 = arith.constant 0 : index
    %c0_43 = arith.constant 0 : index
    %80 = vector.load %arg8[%c2_41, %c0_42, %c0_43] : memref<8x16x128xf32, #tpu.memory_space<vmem>>, vector<1x16x128xf32>
    %81 = vector.shape_cast %80 : vector<1x16x128xf32> to vector<16x128xf32>
    %82 = vector.shape_cast %79 : vector<16x128xf32> to vector<1x16x128xf32>
    tpu.vector_store %arg8[%c2_41, %c0_42, %c0_43], %82 {strides = array<i32>} : memref<8x16x128xf32, #tpu.memory_space<vmem>>, vector<1x16x128xf32>,
    %c8_i32_44 = arith.constant 8 : i32
    %83 = arith.muli %arg1, %c8_i32_44 : i32
    %c3_i32 = arith.constant 3 : i32
    %84 = arith.addi %83, %c3_i32 : i32
    %85 = arith.truncf %79 : vector<16x128xf32> to vector<16x128xbf16>
    %c0_45 = arith.constant 0 : index
    %c0_46 = arith.constant 0 : index
    %86 = vector.load %arg5[%c0_45, %c0_46] : memref<128x256xbf16, #tpu.memory_space<vmem>>, vector<128x256xbf16>
    %cst_47 = arith.constant dense<0.000000e+00> : vector<16x256xf32>
    %87 = tpu.matmul %85, %86, %cst_47 {dimension_numbers = #tpu.dot_dimension_numbers<[1], [0], [0], [1], [0, 0, 1, 1], [], []>} : vector<16x128xbf16>, vector<128x256xbf16>, vector<16x256xf32> -> vector<16x256xf32>
    %c3 = arith.constant 3 : index
    %c0_48 = arith.constant 0 : index
    %c0_49 = arith.constant 0 : index
    %88 = vector.load %arg3[%c3, %c0_48, %c0_49] : memref<8x16x128xf32, #tpu.memory_space<vmem>>, vector<1x16x128xf32>
    %89 = vector.shape_cast %88 : vector<1x16x128xf32> to vector<16x128xf32>
    %90 = vector.extract_strided_slice %87 {offsets = [0, 0], sizes = [16, 128], strides = [1, 1]} : vector<16x256xf32> to vector<16x128xf32>
    %91 = arith.addf %89, %90 : vector<16x128xf32>
    %92 = math.tanh %91 : vector<16x128xf32>
    %93 = arith.truncf %92 : vector<16x128xf32> to vector<16x128xbf16>
    %c0_50 = arith.constant 0 : index
    %c0_51 = arith.constant 0 : index
    %94 = vector.load %arg6[%c0_50, %c0_51] : memref<128x128xbf16, #tpu.memory_space<vmem>>, vector<128x128xbf16>
    %cst_52 = arith.constant dense<0.000000e+00> : vector<16x128xf32>
    %95 = tpu.matmul %93, %94, %cst_52 {dimension_numbers = #tpu.dot_dimension_numbers<[1], [0], [0], [1], [0, 0, 1, 1], [], []>} : vector<16x128xbf16>, vector<128x128xbf16>, vector<16x128xf32> -> vector<16x128xf32>
    %96 = vector.extract_strided_slice %87 {offsets = [0, 128], sizes = [16, 128], strides = [1, 1]} : vector<16x256xf32> to vector<16x128xf32>
    %97 = arith.addf %95, %96 : vector<16x128xf32>
    %c0_53 = arith.constant 0 : index
    %c0_54 = arith.constant 0 : index
    %98 = vector.load %arg7[%c0_53, %c0_54] : memref<1x128xf32, #tpu.memory_space<vmem>>, vector<1x128xf32>
    %99 = vector.broadcast %98 : vector<1x128xf32> to vector<16x128xf32>
    %100 = arith.addf %97, %99 : vector<16x128xf32>
    %101 = arith.index_cast %84 : i32 to index
    %102 = memref.load %arg2[%101] : memref<8xi32, #tpu.memory_space<smem>>
    %103 = vector.broadcast %102 : i32 to vector<16x128xi32>
    %104 = arith.cmpi slt, %3, %103 : vector<16x128xi32>
    %105 = arith.select %104, %100, %79 : vector<16x128xi1>, vector<16x128xf32>
    %c3_55 = arith.constant 3 : index
    %c0_56 = arith.constant 0 : index
    %c0_57 = arith.constant 0 : index
    %106 = vector.load %arg8[%c3_55, %c0_56, %c0_57] : memref<8x16x128xf32, #tpu.memory_space<vmem>>, vector<1x16x128xf32>
    %107 = vector.shape_cast %106 : vector<1x16x128xf32> to vector<16x128xf32>
    %108 = vector.shape_cast %105 : vector<16x128xf32> to vector<1x16x128xf32>
    tpu.vector_store %arg8[%c3_55, %c0_56, %c0_57], %108 {strides = array<i32>} : memref<8x16x128xf32, #tpu.memory_space<vmem>>, vector<1x16x128xf32>,
    %c8_i32_58 = arith.constant 8 : i32
    %109 = arith.muli %arg1, %c8_i32_58 : i32
    %c4_i32 = arith.constant 4 : i32
    %110 = arith.addi %109, %c4_i32 : i32
    %111 = arith.truncf %105 : vector<16x128xf32> to vector<16x128xbf16>
    %c0_59 = arith.constant 0 : index
    %c0_60 = arith.constant 0 : index
    %112 = vector.load %arg5[%c0_59, %c0_60] : memref<128x256xbf16, #tpu.memory_space<vmem>>, vector<128x256xbf16>
    %cst_61 = arith.constant dense<0.000000e+00> : vector<16x256xf32>
    %113 = tpu.matmul %111, %112, %cst_61 {dimension_numbers = #tpu.dot_dimension_numbers<[1], [0], [0], [1], [0, 0, 1, 1], [], []>} : vector<16x128xbf16>, vector<128x256xbf16>, vector<16x256xf32> -> vector<16x256xf32>
    %c4 = arith.constant 4 : index
    %c0_62 = arith.constant 0 : index
    %c0_63 = arith.constant 0 : index
    %114 = vector.load %arg3[%c4, %c0_62, %c0_63] : memref<8x16x128xf32, #tpu.memory_space<vmem>>, vector<1x16x128xf32>
    %115 = vector.shape_cast %114 : vector<1x16x128xf32> to vector<16x128xf32>
    %116 = vector.extract_strided_slice %113 {offsets = [0, 0], sizes = [16, 128], strides = [1, 1]} : vector<16x256xf32> to vector<16x128xf32>
    %117 = arith.addf %115, %116 : vector<16x128xf32>
    %118 = math.tanh %117 : vector<16x128xf32>
    %119 = arith.truncf %118 : vector<16x128xf32> to vector<16x128xbf16>
    %c0_64 = arith.constant 0 : index
    %c0_65 = arith.constant 0 : index
    %120 = vector.load %arg6[%c0_64, %c0_65] : memref<128x128xbf16, #tpu.memory_space<vmem>>, vector<128x128xbf16>
    %cst_66 = arith.constant dense<0.000000e+00> : vector<16x128xf32>
    %121 = tpu.matmul %119, %120, %cst_66 {dimension_numbers = #tpu.dot_dimension_numbers<[1], [0], [0], [1], [0, 0, 1, 1], [], []>} : vector<16x128xbf16>, vector<128x128xbf16>, vector<16x128xf32> -> vector<16x128xf32>
    %122 = vector.extract_strided_slice %113 {offsets = [0, 128], sizes = [16, 128], strides = [1, 1]} : vector<16x256xf32> to vector<16x128xf32>
    %123 = arith.addf %121, %122 : vector<16x128xf32>
    %c0_67 = arith.constant 0 : index
    %c0_68 = arith.constant 0 : index
    %124 = vector.load %arg7[%c0_67, %c0_68] : memref<1x128xf32, #tpu.memory_space<vmem>>, vector<1x128xf32>
    %125 = vector.broadcast %124 : vector<1x128xf32> to vector<16x128xf32>
    %126 = arith.addf %123, %125 : vector<16x128xf32>
    %127 = arith.index_cast %110 : i32 to index
    %128 = memref.load %arg2[%127] : memref<8xi32, #tpu.memory_space<smem>>
    %129 = vector.broadcast %128 : i32 to vector<16x128xi32>
    %130 = arith.cmpi slt, %3, %129 : vector<16x128xi32>
    %131 = arith.select %130, %126, %105 : vector<16x128xi1>, vector<16x128xf32>
    %c4_69 = arith.constant 4 : index
    %c0_70 = arith.constant 0 : index
    %c0_71 = arith.constant 0 : index
    %132 = vector.load %arg8[%c4_69, %c0_70, %c0_71] : memref<8x16x128xf32, #tpu.memory_space<vmem>>, vector<1x16x128xf32>
    %133 = vector.shape_cast %132 : vector<1x16x128xf32> to vector<16x128xf32>
    %134 = vector.shape_cast %131 : vector<16x128xf32> to vector<1x16x128xf32>
    tpu.vector_store %arg8[%c4_69, %c0_70, %c0_71], %134 {strides = array<i32>} : memref<8x16x128xf32, #tpu.memory_space<vmem>>, vector<1x16x128xf32>,
    %c8_i32_72 = arith.constant 8 : i32
    %135 = arith.muli %arg1, %c8_i32_72 : i32
    %c5_i32 = arith.constant 5 : i32
    %136 = arith.addi %135, %c5_i32 : i32
    %137 = arith.truncf %131 : vector<16x128xf32> to vector<16x128xbf16>
    %c0_73 = arith.constant 0 : index
    %c0_74 = arith.constant 0 : index
    %138 = vector.load %arg5[%c0_73, %c0_74] : memref<128x256xbf16, #tpu.memory_space<vmem>>, vector<128x256xbf16>
    %cst_75 = arith.constant dense<0.000000e+00> : vector<16x256xf32>
    %139 = tpu.matmul %137, %138, %cst_75 {dimension_numbers = #tpu.dot_dimension_numbers<[1], [0], [0], [1], [0, 0, 1, 1], [], []>} : vector<16x128xbf16>, vector<128x256xbf16>, vector<16x256xf32> -> vector<16x256xf32>
    %c5 = arith.constant 5 : index
    %c0_76 = arith.constant 0 : index
    %c0_77 = arith.constant 0 : index
    %140 = vector.load %arg3[%c5, %c0_76, %c0_77] : memref<8x16x128xf32, #tpu.memory_space<vmem>>, vector<1x16x128xf32>
    %141 = vector.shape_cast %140 : vector<1x16x128xf32> to vector<16x128xf32>
    %142 = vector.extract_strided_slice %139 {offsets = [0, 0], sizes = [16, 128], strides = [1, 1]} : vector<16x256xf32> to vector<16x128xf32>
    %143 = arith.addf %141, %142 : vector<16x128xf32>
    %144 = math.tanh %143 : vector<16x128xf32>
    %145 = arith.truncf %144 : vector<16x128xf32> to vector<16x128xbf16>
    %c0_78 = arith.constant 0 : index
    %c0_79 = arith.constant 0 : index
    %146 = vector.load %arg6[%c0_78, %c0_79] : memref<128x128xbf16, #tpu.memory_space<vmem>>, vector<128x128xbf16>
    %cst_80 = arith.constant dense<0.000000e+00> : vector<16x128xf32>
    %147 = tpu.matmul %145, %146, %cst_80 {dimension_numbers = #tpu.dot_dimension_numbers<[1], [0], [0], [1], [0, 0, 1, 1], [], []>} : vector<16x128xbf16>, vector<128x128xbf16>, vector<16x128xf32> -> vector<16x128xf32>
    %148 = vector.extract_strided_slice %139 {offsets = [0, 128], sizes = [16, 128], strides = [1, 1]} : vector<16x256xf32> to vector<16x128xf32>
    %149 = arith.addf %147, %148 : vector<16x128xf32>
    %c0_81 = arith.constant 0 : index
    %c0_82 = arith.constant 0 : index
    %150 = vector.load %arg7[%c0_81, %c0_82] : memref<1x128xf32, #tpu.memory_space<vmem>>, vector<1x128xf32>
    %151 = vector.broadcast %150 : vector<1x128xf32> to vector<16x128xf32>
    %152 = arith.addf %149, %151 : vector<16x128xf32>
    %153 = arith.index_cast %136 : i32 to index
    %154 = memref.load %arg2[%153] : memref<8xi32, #tpu.memory_space<smem>>
    %155 = vector.broadcast %154 : i32 to vector<16x128xi32>
    %156 = arith.cmpi slt, %3, %155 : vector<16x128xi32>
    %157 = arith.select %156, %152, %131 : vector<16x128xi1>, vector<16x128xf32>
    %c5_83 = arith.constant 5 : index
    %c0_84 = arith.constant 0 : index
    %c0_85 = arith.constant 0 : index
    %158 = vector.load %arg8[%c5_83, %c0_84, %c0_85] : memref<8x16x128xf32, #tpu.memory_space<vmem>>, vector<1x16x128xf32>
    %159 = vector.shape_cast %158 : vector<1x16x128xf32> to vector<16x128xf32>
    %160 = vector.shape_cast %157 : vector<16x128xf32> to vector<1x16x128xf32>
    tpu.vector_store %arg8[%c5_83, %c0_84, %c0_85], %160 {strides = array<i32>} : memref<8x16x128xf32, #tpu.memory_space<vmem>>, vector<1x16x128xf32>,
    %c8_i32_86 = arith.constant 8 : i32
    %161 = arith.muli %arg1, %c8_i32_86 : i32
    %c6_i32 = arith.constant 6 : i32
    %162 = arith.addi %161, %c6_i32 : i32
    %163 = arith.truncf %157 : vector<16x128xf32> to vector<16x128xbf16>
    %c0_87 = arith.constant 0 : index
    %c0_88 = arith.constant 0 : index
    %164 = vector.load %arg5[%c0_87, %c0_88] : memref<128x256xbf16, #tpu.memory_space<vmem>>, vector<128x256xbf16>
    %cst_89 = arith.constant dense<0.000000e+00> : vector<16x256xf32>
    %165 = tpu.matmul %163, %164, %cst_89 {dimension_numbers = #tpu.dot_dimension_numbers<[1], [0], [0], [1], [0, 0, 1, 1], [], []>} : vector<16x128xbf16>, vector<128x256xbf16>, vector<16x256xf32> -> vector<16x256xf32>
    %c6 = arith.constant 6 : index
    %c0_90 = arith.constant 0 : index
    %c0_91 = arith.constant 0 : index
    %166 = vector.load %arg3[%c6, %c0_90, %c0_91] : memref<8x16x128xf32, #tpu.memory_space<vmem>>, vector<1x16x128xf32>
    %167 = vector.shape_cast %166 : vector<1x16x128xf32> to vector<16x128xf32>
    %168 = vector.extract_strided_slice %165 {offsets = [0, 0], sizes = [16, 128], strides = [1, 1]} : vector<16x256xf32> to vector<16x128xf32>
    %169 = arith.addf %167, %168 : vector<16x128xf32>
    %170 = math.tanh %169 : vector<16x128xf32>
    %171 = arith.truncf %170 : vector<16x128xf32> to vector<16x128xbf16>
    %c0_92 = arith.constant 0 : index
    %c0_93 = arith.constant 0 : index
    %172 = vector.load %arg6[%c0_92, %c0_93] : memref<128x128xbf16, #tpu.memory_space<vmem>>, vector<128x128xbf16>
    %cst_94 = arith.constant dense<0.000000e+00> : vector<16x128xf32>
    %173 = tpu.matmul %171, %172, %cst_94 {dimension_numbers = #tpu.dot_dimension_numbers<[1], [0], [0], [1], [0, 0, 1, 1], [], []>} : vector<16x128xbf16>, vector<128x128xbf16>, vector<16x128xf32> -> vector<16x128xf32>
    %174 = vector.extract_strided_slice %165 {offsets = [0, 128], sizes = [16, 128], strides = [1, 1]} : vector<16x256xf32> to vector<16x128xf32>
    %175 = arith.addf %173, %174 : vector<16x128xf32>
    %c0_95 = arith.constant 0 : index
    %c0_96 = arith.constant 0 : index
    %176 = vector.load %arg7[%c0_95, %c0_96] : memref<1x128xf32, #tpu.memory_space<vmem>>, vector<1x128xf32>
    %177 = vector.broadcast %176 : vector<1x128xf32> to vector<16x128xf32>
    %178 = arith.addf %175, %177 : vector<16x128xf32>
    %179 = arith.index_cast %162 : i32 to index
    %180 = memref.load %arg2[%179] : memref<8xi32, #tpu.memory_space<smem>>
    %181 = vector.broadcast %180 : i32 to vector<16x128xi32>
    %182 = arith.cmpi slt, %3, %181 : vector<16x128xi32>
    %183 = arith.select %182, %178, %157 : vector<16x128xi1>, vector<16x128xf32>
    %c6_97 = arith.constant 6 : index
    %c0_98 = arith.constant 0 : index
    %c0_99 = arith.constant 0 : index
    %184 = vector.load %arg8[%c6_97, %c0_98, %c0_99] : memref<8x16x128xf32, #tpu.memory_space<vmem>>, vector<1x16x128xf32>
    %185 = vector.shape_cast %184 : vector<1x16x128xf32> to vector<16x128xf32>
    %186 = vector.shape_cast %183 : vector<16x128xf32> to vector<1x16x128xf32>
    tpu.vector_store %arg8[%c6_97, %c0_98, %c0_99], %186 {strides = array<i32>} : memref<8x16x128xf32, #tpu.memory_space<vmem>>, vector<1x16x128xf32>,
    %c8_i32_100 = arith.constant 8 : i32
    %187 = arith.muli %arg1, %c8_i32_100 : i32
    %c7_i32 = arith.constant 7 : i32
    %188 = arith.addi %187, %c7_i32 : i32
    %189 = arith.truncf %183 : vector<16x128xf32> to vector<16x128xbf16>
    %c0_101 = arith.constant 0 : index
    %c0_102 = arith.constant 0 : index
    %190 = vector.load %arg5[%c0_101, %c0_102] : memref<128x256xbf16, #tpu.memory_space<vmem>>, vector<128x256xbf16>
    %cst_103 = arith.constant dense<0.000000e+00> : vector<16x256xf32>
    %191 = tpu.matmul %189, %190, %cst_103 {dimension_numbers = #tpu.dot_dimension_numbers<[1], [0], [0], [1], [0, 0, 1, 1], [], []>} : vector<16x128xbf16>, vector<128x256xbf16>, vector<16x256xf32> -> vector<16x256xf32>
    %c7 = arith.constant 7 : index
    %c0_104 = arith.constant 0 : index
    %c0_105 = arith.constant 0 : index
    %192 = vector.load %arg3[%c7, %c0_104, %c0_105] : memref<8x16x128xf32, #tpu.memory_space<vmem>>, vector<1x16x128xf32>
    %193 = vector.shape_cast %192 : vector<1x16x128xf32> to vector<16x128xf32>
    %194 = vector.extract_strided_slice %191 {offsets = [0, 0], sizes = [16, 128], strides = [1, 1]} : vector<16x256xf32> to vector<16x128xf32>
    %195 = arith.addf %193, %194 : vector<16x128xf32>
    %196 = math.tanh %195 : vector<16x128xf32>
    %197 = arith.truncf %196 : vector<16x128xf32> to vector<16x128xbf16>
    %c0_106 = arith.constant 0 : index
    %c0_107 = arith.constant 0 : index
    %198 = vector.load %arg6[%c0_106, %c0_107] : memref<128x128xbf16, #tpu.memory_space<vmem>>, vector<128x128xbf16>
    %cst_108 = arith.constant dense<0.000000e+00> : vector<16x128xf32>
    %199 = tpu.matmul %197, %198, %cst_108 {dimension_numbers = #tpu.dot_dimension_numbers<[1], [0], [0], [1], [0, 0, 1, 1], [], []>} : vector<16x128xbf16>, vector<128x128xbf16>, vector<16x128xf32> -> vector<16x128xf32>
    %200 = vector.extract_strided_slice %191 {offsets = [0, 128], sizes = [16, 128], strides = [1, 1]} : vector<16x256xf32> to vector<16x128xf32>
    %201 = arith.addf %199, %200 : vector<16x128xf32>
    %c0_109 = arith.constant 0 : index
    %c0_110 = arith.constant 0 : index
    %202 = vector.load %arg7[%c0_109, %c0_110] : memref<1x128xf32, #tpu.memory_space<vmem>>, vector<1x128xf32>
    %203 = vector.broadcast %202 : vector<1x128xf32> to vector<16x128xf32>
    %204 = arith.addf %201, %203 : vector<16x128xf32>
    %205 = arith.index_cast %188 : i32 to index
    %206 = memref.load %arg2[%205] : memref<8xi32, #tpu.memory_space<smem>>
    %207 = vector.broadcast %206 : i32 to vector<16x128xi32>
    %208 = arith.cmpi slt, %3, %207 : vector<16x128xi32>
    %209 = arith.select %208, %204, %183 : vector<16x128xi1>, vector<16x128xf32>
    %c7_111 = arith.constant 7 : index
    %c0_112 = arith.constant 0 : index
    %c0_113 = arith.constant 0 : index
    %210 = vector.load %arg8[%c7_111, %c0_112, %c0_113] : memref<8x16x128xf32, #tpu.memory_space<vmem>>, vector<1x16x128xf32>
    %211 = vector.shape_cast %210 : vector<1x16x128xf32> to vector<16x128xf32>
    %212 = vector.shape_cast %209 : vector<16x128xf32> to vector<1x16x128xf32>
    tpu.vector_store %arg8[%c7_111, %c0_112, %c0_113], %212 {strides = array<i32>} : memref<8x16x128xf32, #tpu.memory_space<vmem>>, vector<1x16x128xf32>,
    %c0_114 = arith.constant 0 : index
    %c0_115 = arith.constant 0 : index
    %213 = vector.load %arg9[%c0_114, %c0_115] : memref<16x128xf32, #tpu.memory_space<vmem>>, vector<16x128xf32>
    tpu.vector_store %arg9[%c0_114, %c0_115], %209 {strides = array<i32>} : memref<16x128xf32, #tpu.memory_space<vmem>>, vector<16x128xf32>,
    return
  }
  func.func @transform_0(%arg0: i32, %arg1: i32, %arg2: memref<8xi32, #tpu.memory_space<smem>>) -> (i32, i32, i32) {
    %c0_i32 = arith.constant 0 : i32
    %c0_i32_0 = arith.constant 0 : i32
    return %arg1, %arg0, %c0_i32 : i32, i32, i32
  }
  func.func @transform_1(%arg0: i32, %arg1: i32, %arg2: memref<8xi32, #tpu.memory_space<smem>>) -> (i32, i32) {
    %c0_i32 = arith.constant 0 : i32
    %c0_i32_0 = arith.constant 0 : i32
    return %arg0, %c0_i32 : i32, i32
  }
  func.func @transform_2(%arg0: i32, %arg1: i32, %arg2: memref<8xi32, #tpu.memory_space<smem>>) -> (i32, i32) {
    %c0_i32 = arith.constant 0 : i32
    %c0_i32_0 = arith.constant 0 : i32
    %c0_i32_1 = arith.constant 0 : i32
    return %c0_i32, %c0_i32_0 : i32, i32
  }
  func.func @transform_3(%arg0: i32, %arg1: i32, %arg2: memref<8xi32, #tpu.memory_space<smem>>) -> (i32, i32) {
    %c0_i32 = arith.constant 0 : i32
    %c0_i32_0 = arith.constant 0 : i32
    %c0_i32_1 = arith.constant 0 : i32
    return %c0_i32, %c0_i32_0 : i32, i32
  }
  func.func @transform_4(%arg0: i32, %arg1: i32, %arg2: memref<8xi32, #tpu.memory_space<smem>>) -> (i32, i32) {
    %c0_i32 = arith.constant 0 : i32
    %c0_i32_0 = arith.constant 0 : i32
    %c0_i32_1 = arith.constant 0 : i32
    return %c0_i32, %c0_i32_0 : i32, i32
  }
  func.func @transform_5(%arg0: i32, %arg1: i32, %arg2: memref<8xi32, #tpu.memory_space<smem>>) -> (i32, i32, i32) {
    %c0_i32 = arith.constant 0 : i32
    %c0_i32_0 = arith.constant 0 : i32
    return %arg1, %arg0, %c0_i32 : i32, i32, i32
  }
  func.func @transform_6(%arg0: i32, %arg1: i32, %arg2: memref<8xi32, #tpu.memory_space<smem>>) -> (i32, i32) {
    %c0_i32 = arith.constant 0 : i32
    %c0_i32_0 = arith.constant 0 : i32
    return %arg0, %c0_i32 : i32, i32
  }
}

</mosaic_0001>

<llo_original>
// kernel: tpu_custom_call.1
$region0: #{tpu_custom_call.1}
  #allocation0 [shape = 'u32[]', space=smem, size = 0x4, offset = 0x4, fixed_abs, tag = 'smem constant byte address 0x4 - core index']
  #allocation1 [shape = 'u32[144,128]{1,0:T(1,128)}', space=vmem, size = 0x12000, scoped, tag = 'internal scratch']
  #allocation2 [shape = 's32[1]{0}', space=sflag, size = 0x4, scoped, tag = 'scoped memory for tpu_custom_call.1']
  #allocation3 [shape = 'u8[512]{0}', space=smem, size = 0x200, scoped, tag = 'prefetched SMEM operand 0']
  %s0 = inlined_call_operand.hbm [shape: s32[8], index: 0, kind: input, shape index: {}]
  %s1 = inlined_call_operand.hbm [shape: f32[8,16,128], index: 1, kind: input, shape index: {}]
  %s2 = inlined_call_operand.hbm [shape: f32[16,128], index: 2, kind: input, shape index: {}]
  %s3 = inlined_call_operand.hbm [shape: bf16[128,256], index: 3, kind: input, shape index: {}]
  %s4 = inlined_call_operand.hbm [shape: bf16[128,128], index: 4, kind: input, shape index: {}]
  %s5 = inlined_call_operand.vmem [shape: f32[1,128], index: 5, kind: input, shape index: {}]
  %s6 = inlined_call_operand.hbm [shape: f32[8,16,128], index: 6, kind: output, shape index: {0}]
  %s7 = inlined_call_operand.hbm [shape: f32[16,128], index: 7, kind: output, shape index: {1}]
  %8 = xla_tuple %s6, %s7
  %s9 = sld [smem:[#allocation0]]
  $region58: #{tpu_custom_call.1} parent=0
    _
  %s11 = ssub.s32 1, %s9
  %s12 = scalar_select 0, %s11, %s9
  %14 = dma.hbm_to_smem %s0, 16, [#allocation3], [#allocation2]
  %15 = dma.done [#allocation2], 16
  %16 = sfence
  $region1: #{tpu_custom_call.1} parent=0
    #allocation4 [shape = 'u8[65536]{0}', space=vmem, size = 0x10000, scoped, tag = 'input window, operand 1, single buffered']
    #allocation5 [shape = 's32[1]{0}', space=sflag, size = 0x4, scoped, tag = 'scoped memory for tpu_custom_call.1']
    #allocation6 [shape = 's32[1]{0}', space=sflag, size = 0x4, scoped, tag = 'scoped memory for tpu_custom_call.1']
    #allocation7 [shape = 'u8[8192]{0}', space=vmem, size = 0x2000, scoped, tag = 'input window, operand 2, single buffered']
    #allocation8 [shape = 's32[1]{0}', space=sflag, size = 0x4, scoped, tag = 'scoped memory for tpu_custom_call.1']
    #allocation9 [shape = 'u8[65536]{0}', space=vmem, size = 0x10000, scoped, tag = 'input window, operand 3, single buffered']
    #allocation10 [shape = 'u8[32768]{0}', space=vmem, size = 0x8000, scoped, tag = 'input window, operand 4, single buffered']
    #allocation11 [shape = 's32[1]{0}', space=sflag, size = 0x4, scoped, tag = 'scoped memory for tpu_custom_call.1']
    #allocation12 [shape = 'u8[65536]{0}', space=vmem, size = 0x10000, scoped, tag = 'output window, operand 0, single buffered']
    #allocation13 [shape = 'u8[8192]{0}', space=vmem, size = 0x2000, scoped, tag = 'output window, operand 1, single buffered']
    #allocation14 [shape = 's32[1]{0}', space=sflag, size = 0x4, scoped, tag = 'scoped memory for tpu_custom_call.1']
    %17 = vsyncpa [#allocation5], 0
    %18 = vsyncpa [#allocation8], 0
    %19 = vsyncpa [#allocation11], 0
    %20 = vsyncpa [#allocation6], 0
    %21 = vsyncpa [#allocation14], 0
    // Predicated region
    $region2: #{tpu_custom_call.1} parent=1 // pred_check
      _
    $region3: #{tpu_custom_call.1} parent=1 // pred_check_branch
      %23 = sbr.rel (0) target = $region5
    $region4: #{tpu_custom_call.1} parent=1 // pred_region
      %s25 = ssub.s32 2048, 2048
      %26 = vsyncadd [#allocation5], %s25
      %s27 = sshll.u32 [#allocation4], 4
      %s28 = int_to_ptr.vmem [resolvable:$true] %s27
      %33 = dma.hbm_to_vmem [thread:$0]  %s1, 2048, %s28, [#allocation5], 128, 128, 8
    $region5: #{tpu_custom_call.1} parent=1 // pred_fallthru
      _
    // Predicated region
    $region6: #{tpu_custom_call.1} parent=1 // pred_check
      _
    $region7: #{tpu_custom_call.1} parent=1 // pred_check_branch
      %35 = sbr.rel (0) target = $region9
    $region8: #{tpu_custom_call.1} parent=1 // pred_region
      %s37 = ssub.s32 256, 256
      %38 = vsyncadd [#allocation8], %s37
      %s39 = sshll.u32 [#allocation7], 4
      %s40 = int_to_ptr.vmem [resolvable:$true] %s39
      %45 = dma.hbm_to_vmem [thread:$0]  %s2, 256, %s40, [#allocation8], 128, 128, 8
    $region9: #{tpu_custom_call.1} parent=1 // pred_fallthru
      _
    // Predicated region
    $region10: #{tpu_custom_call.1} parent=1 // pred_check
      _
    $region11: #{tpu_custom_call.1} parent=1 // pred_check_branch
      %47 = sbr.rel (0) target = $region13
    $region12: #{tpu_custom_call.1} parent=1 // pred_region
      %s49 = ssub.s32 2048, 2048
      %50 = vsyncadd [#allocation8], %s49
      %s51 = sshll.u32 [#allocation9], 4
      %s52 = int_to_ptr.vmem [resolvable:$true] %s51
      %57 = dma.hbm_to_vmem [thread:$0]  %s3, 2048, %s52, [#allocation8], 128, 128, 8
    $region13: #{tpu_custom_call.1} parent=1 // pred_fallthru
      _
    // Predicated region
    $region14: #{tpu_custom_call.1} parent=1 // pred_check
      _
    $region15: #{tpu_custom_call.1} parent=1 // pred_check_branch
      %59 = sbr.rel (0) target = $region17
    $region16: #{tpu_custom_call.1} parent=1 // pred_region
      %s61 = ssub.s32 1024, 1024
      %62 = vsyncadd [#allocation11], %s61
      %s63 = sshll.u32 [#allocation10], 4
      %s64 = int_to_ptr.vmem [resolvable:$true] %s63
      %69 = dma.hbm_to_vmem [thread:$0]  %s4, 1024, %s64, [#allocation11], 64, 64, 4
    $region17: #{tpu_custom_call.1} parent=1 // pred_fallthru
      _
    // Predicated region
    $region18: #{tpu_custom_call.1} parent=1 // pred_check
      _
    $region19: #{tpu_custom_call.1} parent=1 // pred_check_branch
      %71 = sbr.rel (0) target = $region21
    $region20: #{tpu_custom_call.1} parent=1 // pred_region
      _
    $region21: #{tpu_custom_call.1} parent=1 // pred_fallthru
      _
    // Predicated region
    $region22: #{tpu_custom_call.1} parent=1 // pred_check
      _
    $region23: #{tpu_custom_call.1} parent=1 // pred_check_branch
      %73 = sbr.rel (0) target = $region25
    $region24: #{tpu_custom_call.1} parent=1 // pred_region
      %74 = dma.done [#allocation5], 2048
    $region25: #{tpu_custom_call.1} parent=1 // pred_fallthru
      _
    // Predicated region
    $region26: #{tpu_custom_call.1} parent=1 // pred_check
      _
    $region27: #{tpu_custom_call.1} parent=1 // pred_check_branch
      %76 = sbr.rel (0) target = $region29
    $region28: #{tpu_custom_call.1} parent=1 // pred_region
      %77 = dma.done [#allocation8], 256
    $region29: #{tpu_custom_call.1} parent=1 // pred_fallthru
      _
    // Predicated region
    $region30: #{tpu_custom_call.1} parent=1 // pred_check
      _
    $region31: #{tpu_custom_call.1} parent=1 // pred_check_branch
      %79 = sbr.rel (0) target = $region33
    $region32: #{tpu_custom_call.1} parent=1 // pred_region
      %80 = dma.done [#allocation8], 2048
    $region33: #{tpu_custom_call.1} parent=1 // pred_fallthru
      _
    // Predicated region
    $region34: #{tpu_custom_call.1} parent=1 // pred_check
      _
    $region35: #{tpu_custom_call.1} parent=1 // pred_check_branch
      %82 = sbr.rel (0) target = $region37
    $region36: #{tpu_custom_call.1} parent=1 // pred_region
      %83 = dma.done [#allocation11], 1024
    $region37: #{tpu_custom_call.1} parent=1 // pred_fallthru
      _
    %p85 = scmp.eq.s32.totalorder 0, 0
    // Predicated region
    $region38: #{tpu_custom_call.1} parent=1 // pred_check
      %p86 = pneg %p85
    $region39: #{tpu_custom_call.1} parent=1 // pred_check_branch
      %88 = sbr.rel (%p86) target = $region41
    $region40: #{tpu_custom_call.1} parent=1 // pred_region
      %v89 = vld [vmem:[#allocation7] sm:$0xff]
      %v90 = vld [vmem:[#allocation7 + $0x8] sm:$0xff]
      %91 = vst [vmem:[#allocation13] sm:$0xff] %v89
      %92 = vst [vmem:[#allocation13 + $0x8] sm:$0xff] %v90
    $region41: #{tpu_custom_call.1} parent=1 // pred_fallthru
      _
    %v93 = vlaneseq
    %v94 = vand.u32 %v93, 127
    %v95 = vld [vmem:[#allocation13] sm:$0xff]
    %v96 = vld [vmem:[#allocation13 + $0x8] sm:$0xff]
    %s97 = smul.u32 0, 8
    %v98 = vpack.c.bf16 %v96, %v95
    %v99 = vld [vmem:[#allocation9] sm:$0xff]
    %v100 = vld [vmem:[#allocation9 + $0x8] sm:$0xff]
    %v101 = vld [vmem:[#allocation9 + $0x10] sm:$0xff]
    %v102 = vld [vmem:[#allocation9 + $0x18] sm:$0xff]
    %v103 = vld [vmem:[#allocation9 + $0x20] sm:$0xff]
    %v104 = vld [vmem:[#allocation9 + $0x28] sm:$0xff]
    %v105 = vld [vmem:[#allocation9 + $0x30] sm:$0xff]
    %v106 = vld [vmem:[#allocation9 + $0x38] sm:$0xff]
    %v107 = vld [vmem:[#allocation9 + $0x40] sm:$0xff]
    %v108 = vld [vmem:[#allocation9 + $0x48] sm:$0xff]
    %v109 = vld [vmem:[#allocation9 + $0x50] sm:$0xff]
    %v110 = vld [vmem:[#allocation9 + $0x58] sm:$0xff]
    %v111 = vld [vmem:[#allocation9 + $0x60] sm:$0xff]
    %v112 = vld [vmem:[#allocation9 + $0x68] sm:$0xff]
    %v113 = vld [vmem:[#allocation9 + $0x70] sm:$0xff]
    %v114 = vld [vmem:[#allocation9 + $0x78] sm:$0xff]
    %v131 = vunpack.c.l.b16 %v99
    %v132 = vunpack.c.h.b16 %v99
    %v133 = vunpack.c.l.b16 %v100
    %v134 = vunpack.c.h.b16 %v100
    %v135 = vunpack.c.l.b16 %v101
    %v136 = vunpack.c.h.b16 %v101
    %v137 = vunpack.c.l.b16 %v102
    %v138 = vunpack.c.h.b16 %v102
    %v139 = vunpack.c.l.b16 %v103
    %v140 = vunpack.c.h.b16 %v103
    %v141 = vunpack.c.l.b16 %v104
    %v142 = vunpack.c.h.b16 %v104
    %v143 = vunpack.c.l.b16 %v105
    %v144 = vunpack.c.h.b16 %v105
    %v145 = vunpack.c.l.b16 %v106
    %v146 = vunpack.c.h.b16 %v106
    %v147 = vunpack.c.l.b16 %v107
    %v148 = vunpack.c.h.b16 %v107
    %v149 = vunpack.c.l.b16 %v108
    %v150 = vunpack.c.h.b16 %v108
    %v151 = vunpack.c.l.b16 %v109
    %v152 = vunpack.c.h.b16 %v109
    %v153 = vunpack.c.l.b16 %v110
    %v154 = vunpack.c.h.b16 %v110
    %v155 = vunpack.c.l.b16 %v111
    %v156 = vunpack.c.h.b16 %v111
    %v157 = vunpack.c.l.b16 %v112
    %v158 = vunpack.c.h.b16 %v112
    %v159 = vunpack.c.l.b16 %v113
    %v160 = vunpack.c.h.b16 %v113
    %v161 = vunpack.c.l.b16 %v114
    %v162 = vunpack.c.h.b16 %v114
    %v163 = vpack.c.b16 %v133, %v131
    %v164 = vpack.c.b16 %v134, %v132
    %v165 = vpack.c.b16 %v137, %v135
    %v166 = vpack.c.b16 %v138, %v136
    %v167 = vpack.c.b16 %v141, %v139
    %v168 = vpack.c.b16 %v142, %v140
    %v169 = vpack.c.b16 %v145, %v143
    %v170 = vpack.c.b16 %v146, %v144
    %v171 = vpack.c.b16 %v149, %v147
    %v172 = vpack.c.b16 %v150, %v148
    %v173 = vpack.c.b16 %v153, %v151
    %v174 = vpack.c.b16 %v154, %v152
    %v175 = vpack.c.b16 %v157, %v155
    %v176 = vpack.c.b16 %v158, %v156
    %v177 = vpack.c.b16 %v161, %v159
    %v178 = vpack.c.b16 %v162, %v160
    %195 = vmatprep.subr.bf16.mxu0 %v164
    %196 = vmatpush1.bf16.msra.mxu0 %v163
    %197 = vmatprep.subr.bf16.mxu0 %v166
    %198 = vmatpush1.bf16.msra.mxu0 %v165
    %199 = vmatprep.subr.bf16.mxu0 %v168
    %200 = vmatpush1.bf16.msra.mxu0 %v167
    %201 = vmatprep.subr.bf16.mxu0 %v170
    %202 = vmatpush1.bf16.msra.mxu0 %v169
    %203 = vmatprep.subr.bf16.mxu0 %v172
    %204 = vmatpush1.bf16.msra.mxu0 %v171
    %205 = vmatprep.subr.bf16.mxu0 %v174
    %206 = vmatpush1.bf16.msra.mxu0 %v173
    %207 = vmatprep.subr.bf16.mxu0 %v176
    %208 = vmatpush1.bf16.msra.mxu0 %v175
    %209 = vmatprep.subr.bf16.mxu0 %v178
    %210 = vmatpush1.bf16.msra.mxu0 %v177
    %211 = vmatprep.subr.bf16.mxu0 0
    %212 = vmatpush1.bf16.msra.mxu0 0
    %213 = vmatprep.subr.bf16.mxu0 0
    %214 = vmatpush1.bf16.msra.mxu0 0
    %215 = vmatprep.subr.bf16.mxu0 0
    %216 = vmatpush1.bf16.msra.mxu0 0
    %217 = vmatprep.subr.bf16.mxu0 0
    %218 = vmatpush1.bf16.msra.mxu0 0
    %219 = vmatprep.subr.bf16.mxu0 0
    %220 = vmatpush1.bf16.msra.mxu0 0
    %221 = vmatprep.subr.bf16.mxu0 0
    %222 = vmatpush1.bf16.msra.mxu0 0
    %223 = vmatprep.subr.bf16.mxu0 0
    %224 = vmatpush1.bf16.msra.mxu0 0
    %225 = vmatprep.subr.bf16.mxu0 0
    %226 = vmatpush1.bf16.msra.mxu0 0
    %227 = vmatprep.mubr.bf16.mxu0 0
    %228 = vmatmul.mubr.bf16.gmra.mrb[0].mxu0 %v98
    %v229 = vpop.f32.mrb[0].mxu0
    %v230 = vadd.f32 0.0, %v229
    %v231 = vpop.f32.mrb[0].mxu0
    %v232 = vadd.f32 0.0, %v231
    %v233 = vpop.f32.mrb[0].mxu0
    %v234 = vadd.f32 0.0, %v233
    %v235 = vpop.f32.mrb[0].mxu0
    %v236 = vadd.f32 0.0, %v235
    %237 = vdwg.mxu0
    %v238 = vld [vmem:[#allocation4] sm:$0xff]
    %v239 = vld [vmem:[#allocation4 + $0x8] sm:$0xff]
    %v240 = vadd.f32 %v238, %v230
    %v241 = vadd.f32 %v239, %v234
    %v242 = vtanh.pop %v240
    %v243 = vtanh.pop %v241
    %v244 = vpack.c.bf16 %v243, %v242
    %v245 = vld [vmem:[#allocation10] sm:$0xf]
    %v246 = vld [vmem:[#allocation10 + $0x4] sm:$0xf]
    %v247 = vld [vmem:[#allocation10 + $0x8] sm:$0xf]
    %v248 = vld [vmem:[#allocation10 + $0xc] sm:$0xf]
    %v249 = vld [vmem:[#allocation10 + $0x10] sm:$0xf]
    %v250 = vld [vmem:[#allocation10 + $0x14] sm:$0xf]
    %v251 = vld [vmem:[#allocation10 + $0x18] sm:$0xf]
    %v252 = vld [vmem:[#allocation10 + $0x1c] sm:$0xf]
    %v253 = vld [vmem:[#allocation10 + $0x20] sm:$0xf]
    %v254 = vld [vmem:[#allocation10 + $0x24] sm:$0xf]
    %v255 = vld [vmem:[#allocation10 + $0x28] sm:$0xf]
    %v256 = vld [vmem:[#allocation10 + $0x2c] sm:$0xf]
    %v257 = vld [vmem:[#allocation10 + $0x30] sm:$0xf]
    %v258 = vld [vmem:[#allocation10 + $0x34] sm:$0xf]
    %v259 = vld [vmem:[#allocation10 + $0x38] sm:$0xf]
    %v260 = vld [vmem:[#allocation10 + $0x3c] sm:$0xf]
    %v277 = vunpack.c.l.b16 %v245
    %v278 = vunpack.c.l.b16 %v246
    %v279 = vunpack.c.l.b16 %v247
    %v280 = vunpack.c.l.b16 %v248
    %v281 = vunpack.c.l.b16 %v249
    %v282 = vunpack.c.l.b16 %v250
    %v283 = vunpack.c.l.b16 %v251
    %v284 = vunpack.c.l.b16 %v252
    %v285 = vunpack.c.l.b16 %v253
    %v286 = vunpack.c.l.b16 %v254
    %v287 = vunpack.c.l.b16 %v255
    %v288 = vunpack.c.l.b16 %v256
    %v289 = vunpack.c.l.b16 %v257
    %v290 = vunpack.c.l.b16 %v258
    %v291 = vunpack.c.l.b16 %v259
    %v292 = vunpack.c.l.b16 %v260
    %v293 = vpack.c.b16 %v278, %v277
    %v294 = vpack.c.b16 %v280, %v279
    %v295 = vpack.c.b16 %v282, %v281
    %v296 = vpack.c.b16 %v284, %v283
    %v297 = vpack.c.b16 %v286, %v285
    %v298 = vpack.c.b16 %v288, %v287
    %v299 = vpack.c.b16 %v290, %v289
    %v300 = vpack.c.b16 %v292, %v291
    %309 = vmatprep.subr.bf16.mxu0 0
    %310 = vmatpush1.bf16.msra.mxu0 %v293
    %311 = vmatprep.subr.bf16.mxu0 0
    %312 = vmatpush1.bf16.msra.mxu0 %v294
    %313 = vmatprep.subr.bf16.mxu0 0
    %314 = vmatpush1.bf16.msra.mxu0 %v295
    %315 = vmatprep.subr.bf16.mxu0 0
    %316 = vmatpush1.bf16.msra.mxu0 %v296
    %317 = vmatprep.subr.bf16.mxu0 0
    %318 = vmatpush1.bf16.msra.mxu0 %v297
    %319 = vmatprep.subr.bf16.mxu0 0
    %320 = vmatpush1.bf16.msra.mxu0 %v298
    %321 = vmatprep.subr.bf16.mxu0 0
    %322 = vmatpush1.bf16.msra.mxu0 %v299
    %323 = vmatprep.subr.bf16.mxu0 0
    %324 = vmatpush1.bf16.msra.mxu0 %v300
    %325 = vmatprep.subr.bf16.mxu0 0
    %326 = vmatpush1.bf16.msra.mxu0 0
    %327 = vmatprep.subr.bf16.mxu0 0
    %328 = vmatpush1.bf16.msra.mxu0 0
    %329 = vmatprep.subr.bf16.mxu0 0
    %330 = vmatpush1.bf16.msra.mxu0 0
    %331 = vmatprep.subr.bf16.mxu0 0
    %332 = vmatpush1.bf16.msra.mxu0 0
    %333 = vmatprep.subr.bf16.mxu0 0
    %334 = vmatpush1.bf16.msra.mxu0 0
    %335 = vmatprep.subr.bf16.mxu0 0
    %336 = vmatpush1.bf16.msra.mxu0 0
    %337 = vmatprep.subr.bf16.mxu0 0
    %338 = vmatpush1.bf16.msra.mxu0 0
    %339 = vmatprep.subr.bf16.mxu0 0
    %340 = vmatpush1.bf16.msra.mxu0 0
    %341 = vmatprep.mubr.bf16.mxu0 0
    %342 = vmatmul.mubr.bf16.gmra.mrb[0].mxu0 %v244
    %v343 = vpop.f32.mrb[0].mxu0
    %v344 = vadd.f32 %v232, %v343
    %v345 = vpop.f32.mrb[0].mxu0
    %v346 = vpop.f32.mrb[0].mxu0
    %v347 = vadd.f32 %v236, %v346
    %v348 = vpop.f32.mrb[0].mxu0
    %349 = vdwg.mxu0
    %v350 = vld [vmem:[%s5] sm:$0x1]
    %v352 = vlaneseq
    %v353 = vshrl.u32 %v352, 7
    %v354 = vsub.s32 0, %v353
    %v355 = vrot.slane %v350, %v354
    %v357 = vadd.f32 %v344, %v355
    %v358 = vadd.f32 %v347, %v355
    %s359 = sld [smem:[#allocation3 + %s97]]
    %v360 = vstv %s359
    %vm361 = vcmp.lt.s32.totalorder %v94, %v360
    %v362 = vsel %vm361, %v357, %v95
    %v363 = vsel %vm361, %v358, %v96
    %364 = vst [vmem:[#allocation12] sm:$0xff] %v362
    %365 = vst [vmem:[#allocation12 + $0x8] sm:$0xff] %v363
    %s366 = sadd.s32 %s97, 1
    %v367 = vpack.c.bf16 %v363, %v362
    %v368 = vld [vmem:[#allocation9] sm:$0xff]
    %v369 = vld [vmem:[#allocation9 + $0x8] sm:$0xff]
    %v370 = vld [vmem:[#allocation9 + $0x10] sm:$0xff]
    %v371 = vld [vmem:[#allocation9 + $0x18] sm:$0xff]
    %v372 = vld [vmem:[#allocation9 + $0x20] sm:$0xff]
    %v373 = vld [vmem:[#allocation9 + $0x28] sm:$0xff]
    %v374 = vld [vmem:[#allocation9 + $0x30] sm:$0xff]
    %v375 = vld [vmem:[#allocation9 + $0x38] sm:$0xff]
    %v376 = vld [vmem:[#allocation9 + $0x40] sm:$0xff]
    %v377 = vld [vmem:[#allocation9 + $0x48] sm:$0xff]
    %v378 = vld [vmem:[#allocation9 + $0x50] sm:$0xff]
    %v379 = vld [vmem:[#allocation9 + $0x58] sm:$0xff]
    %v380 = vld [vmem:[#allocation9 + $0x60] sm:$0xff]
    %v381 = vld [vmem:[#allocation9 + $0x68] sm:$0xff]
    %v382 = vld [vmem:[#allocation9 + $0x70] sm:$0xff]
    %v383 = vld [vmem:[#allocation9 + $0x78] sm:$0xff]
    %v400 = vunpack.c.l.b16 %v368
    %v401 = vunpack.c.h.b16 %v368
    %v402 = vunpack.c.l.b16 %v369
    %v403 = vunpack.c.h.b16 %v369
    %v404 = vunpack.c.l.b16 %v370
    %v405 = vunpack.c.h.b16 %v370
    %v406 = vunpack.c.l.b16 %v371
    %v407 = vunpack.c.h.b16 %v371
    %v408 = vunpack.c.l.b16 %v372
    %v409 = vunpack.c.h.b16 %v372
    %v410 = vunpack.c.l.b16 %v373
    %v411 = vunpack.c.h.b16 %v373
    %v412 = vunpack.c.l.b16 %v374
    %v413 = vunpack.c.h.b16 %v374
    %v414 = vunpack.c.l.b16 %v375
    %v415 = vunpack.c.h.b16 %v375
    %v416 = vunpack.c.l.b16 %v376
    %v417 = vunpack.c.h.b16 %v376
    %v418 = vunpack.c.l.b16 %v377
    %v419 = vunpack.c.h.b16 %v377
    %v420 = vunpack.c.l.b16 %v378
    %v421 = vunpack.c.h.b16 %v378
    %v422 = vunpack.c.l.b16 %v379
    %v423 = vunpack.c.h.b16 %v379
    %v424 = vunpack.c.l.b16 %v380
    %v425 = vunpack.c.h.b16 %v380
    %v426 = vunpack.c.l.b16 %v381
    %v427 = vunpack.c.h.b16 %v381
    %v428 = vunpack.c.l.b16 %v382
    %v429 = vunpack.c.h.b16 %v382
    %v430 = vunpack.c.l.b16 %v383
    %v431 = vunpack.c.h.b16 %v383
    %v432 = vpack.c.b16 %v402, %v400
    %v433 = vpack.c.b16 %v403, %v401
    %v434 = vpack.c.b16 %v406, %v404
    %v435 = vpack.c.b16 %v407, %v405
    %v436 = vpack.c.b16 %v410, %v408
    %v437 = vpack.c.b16 %v411, %v409
    %v438 = vpack.c.b16 %v414, %v412
    %v439 = vpack.c.b16 %v415, %v413
    %v440 = vpack.c.b16 %v418, %v416
    %v441 = vpack.c.b16 %v419, %v417
    %v442 = vpack.c.b16 %v422, %v420
    %v443 = vpack.c.b16 %v423, %v421
    %v444 = vpack.c.b16 %v426, %v424
    %v445 = vpack.c.b16 %v427, %v425
    %v446 = vpack.c.b16 %v430, %v428
    %v447 = vpack.c.b16 %v431, %v429
    %464 = vmatprep.subr.bf16.mxu0 %v433
    %465 = vmatpush1.bf16.msra.mxu0 %v432
    %466 = vmatprep.subr.bf16.mxu0 %v435
    %467 = vmatpush1.bf16.msra.mxu0 %v434
    %468 = vmatprep.subr.bf16.mxu0 %v437
    %469 = vmatpush1.bf16.msra.mxu0 %v436
    %470 = vmatprep.subr.bf16.mxu0 %v439
    %471 = vmatpush1.bf16.msra.mxu0 %v438
    %472 = vmatprep.subr.bf16.mxu0 %v441
    %473 = vmatpush1.bf16.msra.mxu0 %v440
    %474 = vmatprep.subr.bf16.mxu0 %v443
    %475 = vmatpush1.bf16.msra.mxu0 %v442
    %476 = vmatprep.subr.bf16.mxu0 %v445
    %477 = vmatpush1.bf16.msra.mxu0 %v444
    %478 = vmatprep.subr.bf16.mxu0 %v447
    %479 = vmatpush1.bf16.msra.mxu0 %v446
    %480 = vmatprep.subr.bf16.mxu0 0
    %481 = vmatpush1.bf16.msra.mxu0 0
    %482 = vmatprep.subr.bf16.mxu0 0
    %483 = vmatpush1.bf16.msra.mxu0 0
    %484 = vmatprep.subr.bf16.mxu0 0
    %485 = vmatpush1.bf16.msra.mxu0 0
    %486 = vmatprep.subr.bf16.mxu0 0
    %487 = vmatpush1.bf16.msra.mxu0 0
    %488 = vmatprep.subr.bf16.mxu0 0
    %489 = vmatpush1.bf16.msra.mxu0 0
    %490 = vmatprep.subr.bf16.mxu0 0
    %491 = vmatpush1.bf16.msra.mxu0 0
    %492 = vmatprep.subr.bf16.mxu0 0
    %493 = vmatpush1.bf16.msra.mxu0 0
    %494 = vmatprep.subr.bf16.mxu0 0
    %495 = vmatpush1.bf16.msra.mxu0 0
    %496 = vmatprep.mubr.bf16.mxu0 0
    %497 = vmatmul.mubr.bf16.gmra.mrb[0].mxu0 %v367
    %v498 = vpop.f32.mrb[0].mxu0
    %v499 = vadd.f32 0.0, %v498
    %v500 = vpop.f32.mrb[0].mxu0
    %v501 = vadd.f32 0.0, %v500
    %v502 = vpop.f32.mrb[0].mxu0
    %v503 = vadd.f32 0.0, %v502
    %v504 = vpop.f32.mrb[0].mxu0
    %v505 = vadd.f32 0.0, %v504
    %506 = vdwg.mxu0
    %s507 = scalar_lea.vmem [#allocation4], 16
    %v508 = vld [vmem:[%s507] sm:$0xff]
    %v509 = vld [vmem:[%s507 + $0x8] sm:$0xff]
    %v510 = vadd.f32 %v508, %v499
    %v511 = vadd.f32 %v509, %v503
    %v512 = vtanh.pop %v510
    %v513 = vtanh.pop %v511
    %v514 = vpack.c.bf16 %v513, %v512
    %v515 = vld [vmem:[#allocation10] sm:$0xf]
    %v516 = vld [vmem:[#allocation10 + $0x4] sm:$0xf]
    %v517 = vld [vmem:[#allocation10 + $0x8] sm:$0xf]
    %v518 = vld [vmem:[#allocation10 + $0xc] sm:$0xf]
    %v519 = vld [vmem:[#allocation10 + $0x10] sm:$0xf]
    %v520 = vld [vmem:[#allocation10 + $0x14] sm:$0xf]
    %v521 = vld [vmem:[#allocation10 + $0x18] sm:$0xf]
    %v522 = vld [vmem:[#allocation10 + $0x1c] sm:$0xf]
    %v523 = vld [vmem:[#allocation10 + $0x20] sm:$0xf]
    %v524 = vld [vmem:[#allocation10 + $0x24] sm:$0xf]
    %v525 = vld [vmem:[#allocation10 + $0x28] sm:$0xf]
    %v526 = vld [vmem:[#allocation10 + $0x2c] sm:$0xf]
    %v527 = vld [vmem:[#allocation10 + $0x30] sm:$0xf]
    %v528 = vld [vmem:[#allocation10 + $0x34] sm:$0xf]
    %v529 = vld [vmem:[#allocation10 + $0x38] sm:$0xf]
    %v530 = vld [vmem:[#allocation10 + $0x3c] sm:$0xf]
    %v547 = vunpack.c.l.b16 %v515
    %v548 = vunpack.c.l.b16 %v516
    %v549 = vunpack.c.l.b16 %v517
    %v550 = vunpack.c.l.b16 %v518
    %v551 = vunpack.c.l.b16 %v519
    %v552 = vunpack.c.l.b16 %v520
    %v553 = vunpack.c.l.b16 %v521
    %v554 = vunpack.c.l.b16 %v522
    %v555 = vunpack.c.l.b16 %v523
    %v556 = vunpack.c.l.b16 %v524
    %v557 = vunpack.c.l.b16 %v525
    %v558 = vunpack.c.l.b16 %v526
    %v559 = vunpack.c.l.b16 %v527
    %v560 = vunpack.c.l.b16 %v528
    %v561 = vunpack.c.l.b16 %v529
    %v562 = vunpack.c.l.b16 %v530
    %v563 = vpack.c.b16 %v548, %v547
    %v564 = vpack.c.b16 %v550, %v549
    %v565 = vpack.c.b16 %v552, %v551
    %v566 = vpack.c.b16 %v554, %v553
    %v567 = vpack.c.b16 %v556, %v555
    %v568 = vpack.c.b16 %v558, %v557
    %v569 = vpack.c.b16 %v560, %v559
    %v570 = vpack.c.b16 %v562, %v561
    %579 = vmatprep.subr.bf16.mxu0 0
    %580 = vmatpush1.bf16.msra.mxu0 %v563
    %581 = vmatprep.subr.bf16.mxu0 0
    %582 = vmatpush1.bf16.msra.mxu0 %v564
    %583 = vmatprep.subr.bf16.mxu0 0
    %584 = vmatpush1.bf16.msra.mxu0 %v565
    %585 = vmatprep.subr.bf16.mxu0 0
    %586 = vmatpush1.bf16.msra.mxu0 %v566
    %587 = vmatprep.subr.bf16.mxu0 0
    %588 = vmatpush1.bf16.msra.mxu0 %v567
    %589 = vmatprep.subr.bf16.mxu0 0
    %590 = vmatpush1.bf16.msra.mxu0 %v568
    %591 = vmatprep.subr.bf16.mxu0 0
    %592 = vmatpush1.bf16.msra.mxu0 %v569
    %593 = vmatprep.subr.bf16.mxu0 0
    %594 = vmatpush1.bf16.msra.mxu0 %v570
    %595 = vmatprep.subr.bf16.mxu0 0
    %596 = vmatpush1.bf16.msra.mxu0 0
    %597 = vmatprep.subr.bf16.mxu0 0
    %598 = vmatpush1.bf16.msra.mxu0 0
    %599 = vmatprep.subr.bf16.mxu0 0
    %600 = vmatpush1.bf16.msra.mxu0 0
    %601 = vmatprep.subr.bf16.mxu0 0
    %602 = vmatpush1.bf16.msra.mxu0 0
    %603 = vmatprep.subr.bf16.mxu0 0
    %604 = vmatpush1.bf16.msra.mxu0 0
    %605 = vmatprep.subr.bf16.mxu0 0
    %606 = vmatpush1.bf16.msra.mxu0 0
    %607 = vmatprep.subr.bf16.mxu0 0
    %608 = vmatpush1.bf16.msra.mxu0 0
    %609 = vmatprep.subr.bf16.mxu0 0
    %610 = vmatpush1.bf16.msra.mxu0 0
    %611 = vmatprep.mubr.bf16.mxu0 0
    %612 = vmatmul.mubr.bf16.gmra.mrb[0].mxu0 %v514
    %v613 = vpop.f32.mrb[0].mxu0
    %v614 = vadd.f32 %v501, %v613
    %v615 = vpop.f32.mrb[0].mxu0
    %v616 = vpop.f32.mrb[0].mxu0
    %v617 = vadd.f32 %v505, %v616
    %v618 = vpop.f32.mrb[0].mxu0
    %619 = vdwg.mxu0
    %v620 = vld [vmem:[%s5] sm:$0x1]
    %v622 = vlaneseq
    %v623 = vshrl.u32 %v622, 7
    %v624 = vsub.s32 0, %v623
    %v625 = vrot.slane %v620, %v624
    %v627 = vadd.f32 %v614, %v625
    %v628 = vadd.f32 %v617, %v625
    %s629 = sld [smem:[#allocation3 + %s366]]
    %v630 = vstv %s629
    %vm631 = vcmp.lt.s32.totalorder %v94, %v630
    %v632 = vsel %vm631, %v627, %v362
    %v633 = vsel %vm631, %v628, %v363
    %s634 = scalar_lea.vmem [#allocation12], 16
    %635 = vst [vmem:[%s634] sm:$0xff] %v632
    %636 = vst [vmem:[%s634 + $0x8] sm:$0xff] %v633
    %s637 = sadd.s32 %s97, 2
    %v638 = vpack.c.bf16 %v633, %v632
    %v639 = vld [vmem:[#allocation9] sm:$0xff]
    %v640 = vld [vmem:[#allocation9 + $0x8] sm:$0xff]
    %v641 = vld [vmem:[#allocation9 + $0x10] sm:$0xff]
    %v642 = vld [vmem:[#allocation9 + $0x18] sm:$0xff]
    %v643 = vld [vmem:[#allocation9 + $0x20] sm:$0xff]
    %v644 = vld [vmem:[#allocation9 + $0x28] sm:$0xff]
    %v645 = vld [vmem:[#allocation9 + $0x30] sm:$0xff]
    %v646 = vld [vmem:[#allocation9 + $0x38] sm:$0xff]
    %v647 = vld [vmem:[#allocation9 + $0x40] sm:$0xff]
    %v648 = vld [vmem:[#allocation9 + $0x48] sm:$0xff]
    %v649 = vld [vmem:[#allocation9 + $0x50] sm:$0xff]
    %v650 = vld [vmem:[#allocation9 + $0x58] sm:$0xff]
    %v651 = vld [vmem:[#allocation9 + $0x60] sm:$0xff]
    %v652 = vld [vmem:[#allocation9 + $0x68] sm:$0xff]
    %v653 = vld [vmem:[#allocation9 + $0x70] sm:$0xff]
    %v654 = vld [vmem:[#allocation9 + $0x78] sm:$0xff]
    %v671 = vunpack.c.l.b16 %v639
    %v672 = vunpack.c.h.b16 %v639
    %v673 = vunpack.c.l.b16 %v640
    %v674 = vunpack.c.h.b16 %v640
    %v675 = vunpack.c.l.b16 %v641
    %v676 = vunpack.c.h.b16 %v641
    %v677 = vunpack.c.l.b16 %v642
    %v678 = vunpack.c.h.b16 %v642
    %v679 = vunpack.c.l.b16 %v643
    %v680 = vunpack.c.h.b16 %v643
    %v681 = vunpack.c.l.b16 %v644
    %v682 = vunpack.c.h.b16 %v644
    %v683 = vunpack.c.l.b16 %v645
    %v684 = vunpack.c.h.b16 %v645
    %v685 = vunpack.c.l.b16 %v646
    %v686 = vunpack.c.h.b16 %v646
    %v687 = vunpack.c.l.b16 %v647
    %v688 = vunpack.c.h.b16 %v647
    %v689 = vunpack.c.l.b16 %v648
    %v690 = vunpack.c.h.b16 %v648
    %v691 = vunpack.c.l.b16 %v649
    %v692 = vunpack.c.h.b16 %v649
    %v693 = vunpack.c.l.b16 %v650
    %v694 = vunpack.c.h.b16 %v650
    %v695 = vunpack.c.l.b16 %v651
    %v696 = vunpack.c.h.b16 %v651
    %v697 = vunpack.c.l.b16 %v652
    %v698 = vunpack.c.h.b16 %v652
    %v699 = vunpack.c.l.b16 %v653
    %v700 = vunpack.c.h.b16 %v653
    %v701 = vunpack.c.l.b16 %v654
    %v702 = vunpack.c.h.b16 %v654
    %v703 = vpack.c.b16 %v673, %v671
    %v704 = vpack.c.b16 %v674, %v672
    %v705 = vpack.c.b16 %v677, %v675
    %v706 = vpack.c.b16 %v678, %v676
    %v707 = vpack.c.b16 %v681, %v679
    %v708 = vpack.c.b16 %v682, %v680
    %v709 = vpack.c.b16 %v685, %v683
    %v710 = vpack.c.b16 %v686, %v684
    %v711 = vpack.c.b16 %v689, %v687
    %v712 = vpack.c.b16 %v690, %v688
    %v713 = vpack.c.b16 %v693, %v691
    %v714 = vpack.c.b16 %v694, %v692
    %v715 = vpack.c.b16 %v697, %v695
    %v716 = vpack.c.b16 %v698, %v696
    %v717 = vpack.c.b16 %v701, %v699
    %v718 = vpack.c.b16 %v702, %v700
    %735 = vmatprep.subr.bf16.mxu0 %v704
    %736 = vmatpush1.bf16.msra.mxu0 %v703
    %737 = vmatprep.subr.bf16.mxu0 %v706
    %738 = vmatpush1.bf16.msra.mxu0 %v705
    %739 = vmatprep.subr.bf16.mxu0 %v708
    %740 = vmatpush1.bf16.msra.mxu0 %v707
    %741 = vmatprep.subr.bf16.mxu0 %v710
    %742 = vmatpush1.bf16.msra.mxu0 %v709
    %743 = vmatprep.subr.bf16.mxu0 %v712
    %744 = vmatpush1.bf16.msra.mxu0 %v711
    %745 = vmatprep.subr.bf16.mxu0 %v714
    %746 = vmatpush1.bf16.msra.mxu0 %v713
    %747 = vmatprep.subr.bf16.mxu0 %v716
    %748 = vmatpush1.bf16.msra.mxu0 %v715
    %749 = vmatprep.subr.bf16.mxu0 %v718
    %750 = vmatpush1.bf16.msra.mxu0 %v717
    %751 = vmatprep.subr.bf16.mxu0 0
    %752 = vmatpush1.bf16.msra.mxu0 0
    %753 = vmatprep.subr.bf16.mxu0 0
    %754 = vmatpush1.bf16.msra.mxu0 0
    %755 = vmatprep.subr.bf16.mxu0 0
    %756 = vmatpush1.bf16.msra.mxu0 0
    %757 = vmatprep.subr.bf16.mxu0 0
    %758 = vmatpush1.bf16.msra.mxu0 0
    %759 = vmatprep.subr.bf16.mxu0 0
    %760 = vmatpush1.bf16.msra.mxu0 0
    %761 = vmatprep.subr.bf16.mxu0 0
    %762 = vmatpush1.bf16.msra.mxu0 0
    %763 = vmatprep.subr.bf16.mxu0 0
    %764 = vmatpush1.bf16.msra.mxu0 0
    %765 = vmatprep.subr.bf16.mxu0 0
    %766 = vmatpush1.bf16.msra.mxu0 0
    %767 = vmatprep.mubr.bf16.mxu0 0
    %768 = vmatmul.mubr.bf16.gmra.mrb[0].mxu0 %v638
    %v769 = vpop.f32.mrb[0].mxu0
    %v770 = vadd.f32 0.0, %v769
    %v771 = vpop.f32.mrb[0].mxu0
    %v772 = vadd.f32 0.0, %v771
    %v773 = vpop.f32.mrb[0].mxu0
    %v774 = vadd.f32 0.0, %v773
    %v775 = vpop.f32.mrb[0].mxu0
    %v776 = vadd.f32 0.0, %v775
    %777 = vdwg.mxu0
    %s778 = scalar_lea.vmem [#allocation4], 32
    %v779 = vld [vmem:[%s778] sm:$0xff]
    %v780 = vld [vmem:[%s778 + $0x8] sm:$0xff]
    %v781 = vadd.f32 %v779, %v770
    %v782 = vadd.f32 %v780, %v774
    %v783 = vtanh.pop %v781
    %v784 = vtanh.pop %v782
    %v785 = vpack.c.bf16 %v784, %v783
    %v786 = vld [vmem:[#allocation10] sm:$0xf]
    %v787 = vld [vmem:[#allocation10 + $0x4] sm:$0xf]
    %v788 = vld [vmem:[#allocation10 + $0x8] sm:$0xf]
    %v789 = vld [vmem:[#allocation10 + $0xc] sm:$0xf]
    %v790 = vld [vmem:[#allocation10 + $0x10] sm:$0xf]
    %v791 = vld [vmem:[#allocation10 + $0x14] sm:$0xf]
    %v792 = vld [vmem:[#allocation10 + $0x18] sm:$0xf]
    %v793 = vld [vmem:[#allocation10 + $0x1c] sm:$0xf]
    %v794 = vld [vmem:[#allocation10 + $0x20] sm:$0xf]
    %v795 = vld [vmem:[#allocation10 + $0x24] sm:$0xf]
    %v796 = vld [vmem:[#allocation10 + $0x28] sm:$0xf]
    %v797 = vld [vmem:[#allocation10 + $0x2c] sm:$0xf]
    %v798 = vld [vmem:[#allocation10 + $0x30] sm:$0xf]
    %v799 = vld [vmem:[#allocation10 + $0x34] sm:$0xf]
    %v800 = vld [vmem:[#allocation10 + $0x38] sm:$0xf]
    %v801 = vld [vmem:[#allocation10 + $0x3c] sm:$0xf]
    %v818 = vunpack.c.l.b16 %v786
    %v819 = vunpack.c.l.b16 %v787
    %v820 = vunpack.c.l.b16 %v788
    %v821 = vunpack.c.l.b16 %v789
    %v822 = vunpack.c.l.b16 %v790
    %v823 = vunpack.c.l.b16 %v791
    %v824 = vunpack.c.l.b16 %v792
    %v825 = vunpack.c.l.b16 %v793
    %v826 = vunpack.c.l.b16 %v794
    %v827 = vunpack.c.l.b16 %v795
    %v828 = vunpack.c.l.b16 %v796
    %v829 = vunpack.c.l.b16 %v797
    %v830 = vunpack.c.l.b16 %v798
    %v831 = vunpack.c.l.b16 %v799
    %v832 = vunpack.c.l.b16 %v800
    %v833 = vunpack.c.l.b16 %v801
    %v834 = vpack.c.b16 %v819, %v818
    %v835 = vpack.c.b16 %v821, %v820
    %v836 = vpack.c.b16 %v823, %v822
    %v837 = vpack.c.b16 %v825, %v824
    %v838 = vpack.c.b16 %v827, %v826
    %v839 = vpack.c.b16 %v829, %v828
    %v840 = vpack.c.b16 %v831, %v830
    %v841 = vpack.c.b16 %v833, %v832
    %850 = vmatprep.subr.bf16.mxu0 0
    %851 = vmatpush1.bf16.msra.mxu0 %v834
    %852 = vmatprep.subr.bf16.mxu0 0
    %853 = vmatpush1.bf16.msra.mxu0 %v835
    %854 = vmatprep.subr.bf16.mxu0 0
    %855 = vmatpush1.bf16.msra.mxu0 %v836
    %856 = vmatprep.subr.bf16.mxu0 0
    %857 = vmatpush1.bf16.msra.mxu0 %v837
    %858 = vmatprep.subr.bf16.mxu0 0
    %859 = vmatpush1.bf16.msra.mxu0 %v838
    %860 = vmatprep.subr.bf16.mxu0 0
    %861 = vmatpush1.bf16.msra.mxu0 %v839
    %862 = vmatprep.subr.bf16.mxu0 0
    %863 = vmatpush1.bf16.msra.mxu0 %v840
    %864 = vmatprep.subr.bf16.mxu0 0
    %865 = vmatpush1.bf16.msra.mxu0 %v841
    %866 = vmatprep.subr.bf16.mxu0 0
    %867 = vmatpush1.bf16.msra.mxu0 0
    %868 = vmatprep.subr.bf16.mxu0 0
    %869 = vmatpush1.bf16.msra.mxu0 0
    %870 = vmatprep.subr.bf16.mxu0 0
    %871 = vmatpush1.bf16.msra.mxu0 0
    %872 = vmatprep.subr.bf16.mxu0 0
    %873 = vmatpush1.bf16.msra.mxu0 0
    %874 = vmatprep.subr.bf16.mxu0 0
    %875 = vmatpush1.bf16.msra.mxu0 0
    %876 = vmatprep.subr.bf16.mxu0 0
    %877 = vmatpush1.bf16.msra.mxu0 0
    %878 = vmatprep.subr.bf16.mxu0 0
    %879 = vmatpush1.bf16.msra.mxu0 0
    %880 = vmatprep.subr.bf16.mxu0 0
    %881 = vmatpush1.bf16.msra.mxu0 0
    %882 = vmatprep.mubr.bf16.mxu0 0
    %883 = vmatmul.mubr.bf16.gmra.mrb[0].mxu0 %v785
    %v884 = vpop.f32.mrb[0].mxu0
    %v885 = vadd.f32 %v772, %v884
    %v886 = vpop.f32.mrb[0].mxu0
    %v887 = vpop.f32.mrb[0].mxu0
    %v888 = vadd.f32 %v776, %v887
    %v889 = vpop.f32.mrb[0].mxu0
    %890 = vdwg.mxu0
    %v891 = vld [vmem:[%s5] sm:$0x1]
    %v893 = vlaneseq
    %v894 = vshrl.u32 %v893, 7
    %v895 = vsub.s32 0, %v894
    %v896 = vrot.slane %v891, %v895
    %v898 = vadd.f32 %v885, %v896
    %v899 = vadd.f32 %v888, %v896
    %s900 = sld [smem:[#allocation3 + %s637]]
    %v901 = vstv %s900
    %vm902 = vcmp.lt.s32.totalorder %v94, %v901
    %v903 = vsel %vm902, %v898, %v632
    %v904 = vsel %vm902, %v899, %v633
    %s905 = scalar_lea.vmem [#allocation12], 32
    %906 = vst [vmem:[%s905] sm:$0xff] %v903
    %907 = vst [vmem:[%s905 + $0x8] sm:$0xff] %v904
    %s908 = sadd.s32 %s97, 3
    %v909 = vpack.c.bf16 %v904, %v903
    %v910 = vld [vmem:[#allocation9] sm:$0xff]
    %v911 = vld [vmem:[#allocation9 + $0x8] sm:$0xff]
    %v912 = vld [vmem:[#allocation9 + $0x10] sm:$0xff]
    %v913 = vld [vmem:[#allocation9 + $0x18] sm:$0xff]
    %v914 = vld [vmem:[#allocation9 + $0x20] sm:$0xff]
    %v915 = vld [vmem:[#allocation9 + $0x28] sm:$0xff]
    %v916 = vld [vmem:[#allocation9 + $0x30] sm:$0xff]
    %v917 = vld [vmem:[#allocation9 + $0x38] sm:$0xff]
    %v918 = vld [vmem:[#allocation9 + $0x40] sm:$0xff]
    %v919 = vld [vmem:[#allocation9 + $0x48] sm:$0xff]
    %v920 = vld [vmem:[#allocation9 + $0x50] sm:$0xff]
    %v921 = vld [vmem:[#allocation9 + $0x58] sm:$0xff]
    %v922 = vld [vmem:[#allocation9 + $0x60] sm:$0xff]
    %v923 = vld [vmem:[#allocation9 + $0x68] sm:$0xff]
    %v924 = vld [vmem:[#allocation9 + $0x70] sm:$0xff]
    %v925 = vld [vmem:[#allocation9 + $0x78] sm:$0xff]
    %v942 = vunpack.c.l.b16 %v910
    %v943 = vunpack.c.h.b16 %v910
    %v944 = vunpack.c.l.b16 %v911
    %v945 = vunpack.c.h.b16 %v911
    %v946 = vunpack.c.l.b16 %v912
    %v947 = vunpack.c.h.b16 %v912
    %v948 = vunpack.c.l.b16 %v913
    %v949 = vunpack.c.h.b16 %v913
    %v950 = vunpack.c.l.b16 %v914
    %v951 = vunpack.c.h.b16 %v914
    %v952 = vunpack.c.l.b16 %v915
    %v953 = vunpack.c.h.b16 %v915
    %v954 = vunpack.c.l.b16 %v916
    %v955 = vunpack.c.h.b16 %v916
    %v956 = vunpack.c.l.b16 %v917
    %v957 = vunpack.c.h.b16 %v917
    %v958 = vunpack.c.l.b16 %v918
    %v959 = vunpack.c.h.b16 %v918
    %v960 = vunpack.c.l.b16 %v919
    %v961 = vunpack.c.h.b16 %v919
    %v962 = vunpack.c.l.b16 %v920
    %v963 = vunpack.c.h.b16 %v920
    %v964 = vunpack.c.l.b16 %v921
    %v965 = vunpack.c.h.b16 %v921
    %v966 = vunpack.c.l.b16 %v922
    %v967 = vunpack.c.h.b16 %v922
    %v968 = vunpack.c.l.b16 %v923
    %v969 = vunpack.c.h.b16 %v923
    %v970 = vunpack.c.l.b16 %v924
    %v971 = vunpack.c.h.b16 %v924
    %v972 = vunpack.c.l.b16 %v925
    %v973 = vunpack.c.h.b16 %v925
    %v974 = vpack.c.b16 %v944, %v942
    %v975 = vpack.c.b16 %v945, %v943
    %v976 = vpack.c.b16 %v948, %v946
    %v977 = vpack.c.b16 %v949, %v947
    %v978 = vpack.c.b16 %v952, %v950
    %v979 = vpack.c.b16 %v953, %v951
    %v980 = vpack.c.b16 %v956, %v954
    %v981 = vpack.c.b16 %v957, %v955
    %v982 = vpack.c.b16 %v960, %v958
    %v983 = vpack.c.b16 %v961, %v959
    %v984 = vpack.c.b16 %v964, %v962
    %v985 = vpack.c.b16 %v965, %v963
    %v986 = vpack.c.b16 %v968, %v966
    %v987 = vpack.c.b16 %v969, %v967
    %v988 = vpack.c.b16 %v972, %v970
    %v989 = vpack.c.b16 %v973, %v971
    %1006 = vmatprep.subr.bf16.mxu0 %v975
    %1007 = vmatpush1.bf16.msra.mxu0 %v974
    %1008 = vmatprep.subr.bf16.mxu0 %v977
    %1009 = vmatpush1.bf16.msra.mxu0 %v976
    %1010 = vmatprep.subr.bf16.mxu0 %v979
    %1011 = vmatpush1.bf16.msra.mxu0 %v978
    %1012 = vmatprep.subr.bf16.mxu0 %v981
    %1013 = vmatpush1.bf16.msra.mxu0 %v980
    %1014 = vmatprep.subr.bf16.mxu0 %v983
    %1015 = vmatpush1.bf16.msra.mxu0 %v982
    %1016 = vmatprep.subr.bf16.mxu0 %v985
    %1017 = vmatpush1.bf16.msra.mxu0 %v984
    %1018 = vmatprep.subr.bf16.mxu0 %v987
    %1019 = vmatpush1.bf16.msra.mxu0 %v986
    %1020 = vmatprep.subr.bf16.mxu0 %v989
    %1021 = vmatpush1.bf16.msra.mxu0 %v988
    %1022 = vmatprep.subr.bf16.mxu0 0
    %1023 = vmatpush1.bf16.msra.mxu0 0
    %1024 = vmatprep.subr.bf16.mxu0 0
    %1025 = vmatpush1.bf16.msra.mxu0 0
    %1026 = vmatprep.subr.bf16.mxu0 0
    %1027 = vmatpush1.bf16.msra.mxu0 0
    %1028 = vmatprep.subr.bf16.mxu0 0
    %1029 = vmatpush1.bf16.msra.mxu0 0
    %1030 = vmatprep.subr.bf16.mxu0 0
    %1031 = vmatpush1.bf16.msra.mxu0 0
    %1032 = vmatprep.subr.bf16.mxu0 0
    %1033 = vmatpush1.bf16.msra.mxu0 0
    %1034 = vmatprep.subr.bf16.mxu0 0
    %1035 = vmatpush1.bf16.msra.mxu0 0
    %1036 = vmatprep.subr.bf16.mxu0 0
    %1037 = vmatpush1.bf16.msra.mxu0 0
    %1038 = vmatprep.mubr.bf16.mxu0 0
    %1039 = vmatmul.mubr.bf16.gmra.mrb[0].mxu0 %v909
    %v1040 = vpop.f32.mrb[0].mxu0
    %v1041 = vadd.f32 0.0, %v1040
    %v1042 = vpop.f32.mrb[0].mxu0
    %v1043 = vadd.f32 0.0, %v1042
    %v1044 = vpop.f32.mrb[0].mxu0
    %v1045 = vadd.f32 0.0, %v1044
    %v1046 = vpop.f32.mrb[0].mxu0
    %v1047 = vadd.f32 0.0, %v1046
    %1048 = vdwg.mxu0
    %s1049 = scalar_lea.vmem [#allocation4], 48
    %v1050 = vld [vmem:[%s1049] sm:$0xff]
    %v1051 = vld [vmem:[%s1049 + $0x8] sm:$0xff]
    %v1052 = vadd.f32 %v1050, %v1041
    %v1053 = vadd.f32 %v1051, %v1045
    %v1054 = vtanh.pop %v1052
    %v1055 = vtanh.pop %v1053
    %v1056 = vpack.c.bf16 %v1055, %v1054
    %v1057 = vld [vmem:[#allocation10] sm:$0xf]
    %v1058 = vld [vmem:[#allocation10 + $0x4] sm:$0xf]
    %v1059 = vld [vmem:[#allocation10 + $0x8] sm:$0xf]
    %v1060 = vld [vmem:[#allocation10 + $0xc] sm:$0xf]
    %v1061 = vld [vmem:[#allocation10 + $0x10] sm:$0xf]
    %v1062 = vld [vmem:[#allocation10 + $0x14] sm:$0xf]
    %v1063 = vld [vmem:[#allocation10 + $0x18] sm:$0xf]
    %v1064 = vld [vmem:[#allocation10 + $0x1c] sm:$0xf]
    %v1065 = vld [vmem:[#allocation10 + $0x20] sm:$0xf]
    %v1066 = vld [vmem:[#allocation10 + $0x24] sm:$0xf]
    %v1067 = vld [vmem:[#allocation10 + $0x28] sm:$0xf]
    %v1068 = vld [vmem:[#allocation10 + $0x2c] sm:$0xf]
    %v1069 = vld [vmem:[#allocation10 + $0x30] sm:$0xf]
    %v1070 = vld [vmem:[#allocation10 + $0x34] sm:$0xf]
    %v1071 = vld [vmem:[#allocation10 + $0x38] sm:$0xf]
    %v1072 = vld [vmem:[#allocation10 + $0x3c] sm:$0xf]
    %v1089 = vunpack.c.l.b16 %v1057
    %v1090 = vunpack.c.l.b16 %v1058
    %v1091 = vunpack.c.l.b16 %v1059
    %v1092 = vunpack.c.l.b16 %v1060
    %v1093 = vunpack.c.l.b16 %v1061
    %v1094 = vunpack.c.l.b16 %v1062
    %v1095 = vunpack.c.l.b16 %v1063
    %v1096 = vunpack.c.l.b16 %v1064
    %v1097 = vunpack.c.l.b16 %v1065
    %v1098 = vunpack.c.l.b16 %v1066
    %v1099 = vunpack.c.l.b16 %v1067
    %v1100 = vunpack.c.l.b16 %v1068
    %v1101 = vunpack.c.l.b16 %v1069
    %v1102 = vunpack.c.l.b16 %v1070
    %v1103 = vunpack.c.l.b16 %v1071
    %v1104 = vunpack.c.l.b16 %v1072
    %v1105 = vpack.c.b16 %v1090, %v1089
    %v1106 = vpack.c.b16 %v1092, %v1091
    %v1107 = vpack.c.b16 %v1094, %v1093
    %v1108 = vpack.c.b16 %v1096, %v1095
    %v1109 = vpack.c.b16 %v1098, %v1097
    %v1110 = vpack.c.b16 %v1100, %v1099
    %v1111 = vpack.c.b16 %v1102, %v1101
    %v1112 = vpack.c.b16 %v1104, %v1103
    %1121 = vmatprep.subr.bf16.mxu0 0
    %1122 = vmatpush1.bf16.msra.mxu0 %v1105
    %1123 = vmatprep.subr.bf16.mxu0 0
    %1124 = vmatpush1.bf16.msra.mxu0 %v1106
    %1125 = vmatprep.subr.bf16.mxu0 0
    %1126 = vmatpush1.bf16.msra.mxu0 %v1107
    %1127 = vmatprep.subr.bf16.mxu0 0
    %1128 = vmatpush1.bf16.msra.mxu0 %v1108
    %1129 = vmatprep.subr.bf16.mxu0 0
    %1130 = vmatpush1.bf16.msra.mxu0 %v1109
    %1131 = vmatprep.subr.bf16.mxu0 0
    %1132 = vmatpush1.bf16.msra.mxu0 %v1110
    %1133 = vmatprep.subr.bf16.mxu0 0
    %1134 = vmatpush1.bf16.msra.mxu0 %v1111
    %1135 = vmatprep.subr.bf16.mxu0 0
    %1136 = vmatpush1.bf16.msra.mxu0 %v1112
    %1137 = vmatprep.subr.bf16.mxu0 0
    %1138 = vmatpush1.bf16.msra.mxu0 0
    %1139 = vmatprep.subr.bf16.mxu0 0
    %1140 = vmatpush1.bf16.msra.mxu0 0
    %1141 = vmatprep.subr.bf16.mxu0 0
    %1142 = vmatpush1.bf16.msra.mxu0 0
    %1143 = vmatprep.subr.bf16.mxu0 0
    %1144 = vmatpush1.bf16.msra.mxu0 0
    %1145 = vmatprep.subr.bf16.mxu0 0
    %1146 = vmatpush1.bf16.msra.mxu0 0
    %1147 = vmatprep.subr.bf16.mxu0 0
    %1148 = vmatpush1.bf16.msra.mxu0 0
    %1149 = vmatprep.subr.bf16.mxu0 0
    %1150 = vmatpush1.bf16.msra.mxu0 0
    %1151 = vmatprep.subr.bf16.mxu0 0
    %1152 = vmatpush1.bf16.msra.mxu0 0
    %1153 = vmatprep.mubr.bf16.mxu0 0
    %1154 = vmatmul.mubr.bf16.gmra.mrb[0].mxu0 %v1056
    %v1155 = vpop.f32.mrb[0].mxu0
    %v1156 = vadd.f32 %v1043, %v1155
    %v1157 = vpop.f32.mrb[0].mxu0
    %v1158 = vpop.f32.mrb[0].mxu0
    %v1159 = vadd.f32 %v1047, %v1158
    %v1160 = vpop.f32.mrb[0].mxu0
    %1161 = vdwg.mxu0
    %v1162 = vld [vmem:[%s5] sm:$0x1]
    %v1164 = vlaneseq
    %v1165 = vshrl.u32 %v1164, 7
    %v1166 = vsub.s32 0, %v1165
    %v1167 = vrot.slane %v1162, %v1166
    %v1169 = vadd.f32 %v1156, %v1167
    %v1170 = vadd.f32 %v1159, %v1167
    %s1171 = sld [smem:[#allocation3 + %s908]]
    %v1172 = vstv %s1171
    %vm1173 = vcmp.lt.s32.totalorder %v94, %v1172
    %v1174 = vsel %vm1173, %v1169, %v903
    %v1175 = vsel %vm1173, %v1170, %v904
    %s1176 = scalar_lea.vmem [#allocation12], 48
    %1177 = vst [vmem:[%s1176] sm:$0xff] %v1174
    %1178 = vst [vmem:[%s1176 + $0x8] sm:$0xff] %v1175
    %s1179 = sadd.s32 %s97, 4
    %v1180 = vpack.c.bf16 %v1175, %v1174
    %v1181 = vld [vmem:[#allocation9] sm:$0xff]
    %v1182 = vld [vmem:[#allocation9 + $0x8] sm:$0xff]
    %v1183 = vld [vmem:[#allocation9 + $0x10] sm:$0xff]
    %v1184 = vld [vmem:[#allocation9 + $0x18] sm:$0xff]
    %v1185 = vld [vmem:[#allocation9 + $0x20] sm:$0xff]
    %v1186 = vld [vmem:[#allocation9 + $0x28] sm:$0xff]
    %v1187 = vld [vmem:[#allocation9 + $0x30] sm:$0xff]
    %v1188 = vld [vmem:[#allocation9 + $0x38] sm:$0xff]
    %v1189 = vld [vmem:[#allocation9 + $0x40] sm:$0xff]
    %v1190 = vld [vmem:[#allocation9 + $0x48] sm:$0xff]
    %v1191 = vld [vmem:[#allocation9 + $0x50] sm:$0xff]
    %v1192 = vld [vmem:[#allocation9 + $0x58] sm:$0xff]
    %v1193 = vld [vmem:[#allocation9 + $0x60] sm:$0xff]
    %v1194 = vld [vmem:[#allocation9 + $0x68] sm:$0xff]
    %v1195 = vld [vmem:[#allocation9 + $0x70] sm:$0xff]
    %v1196 = vld [vmem:[#allocation9 + $0x78] sm:$0xff]
    %v1213 = vunpack.c.l.b16 %v1181
    %v1214 = vunpack.c.h.b16 %v1181
    %v1215 = vunpack.c.l.b16 %v1182
    %v1216 = vunpack.c.h.b16 %v1182
    %v1217 = vunpack.c.l.b16 %v1183
    %v1218 = vunpack.c.h.b16 %v1183
    %v1219 = vunpack.c.l.b16 %v1184
    %v1220 = vunpack.c.h.b16 %v1184
    %v1221 = vunpack.c.l.b16 %v1185
    %v1222 = vunpack.c.h.b16 %v1185
    %v1223 = vunpack.c.l.b16 %v1186
    %v1224 = vunpack.c.h.b16 %v1186
    %v1225 = vunpack.c.l.b16 %v1187
    %v1226 = vunpack.c.h.b16 %v1187
    %v1227 = vunpack.c.l.b16 %v1188
    %v1228 = vunpack.c.h.b16 %v1188
    %v1229 = vunpack.c.l.b16 %v1189
    %v1230 = vunpack.c.h.b16 %v1189
    %v1231 = vunpack.c.l.b16 %v1190
    %v1232 = vunpack.c.h.b16 %v1190
    %v1233 = vunpack.c.l.b16 %v1191
    %v1234 = vunpack.c.h.b16 %v1191
    %v1235 = vunpack.c.l.b16 %v1192
    %v1236 = vunpack.c.h.b16 %v1192
    %v1237 = vunpack.c.l.b16 %v1193
    %v1238 = vunpack.c.h.b16 %v1193
    %v1239 = vunpack.c.l.b16 %v1194
    %v1240 = vunpack.c.h.b16 %v1194
    %v1241 = vunpack.c.l.b16 %v1195
    %v1242 = vunpack.c.h.b16 %v1195
    %v1243 = vunpack.c.l.b16 %v1196
    %v1244 = vunpack.c.h.b16 %v1196
    %v1245 = vpack.c.b16 %v1215, %v1213
    %v1246 = vpack.c.b16 %v1216, %v1214
    %v1247 = vpack.c.b16 %v1219, %v1217
    %v1248 = vpack.c.b16 %v1220, %v1218
    %v1249 = vpack.c.b16 %v1223, %v1221
    %v1250 = vpack.c.b16 %v1224, %v1222
    %v1251 = vpack.c.b16 %v1227, %v1225
    %v1252 = vpack.c.b16 %v1228, %v1226
    %v1253 = vpack.c.b16 %v1231, %v1229
    %v1254 = vpack.c.b16 %v1232, %v1230
    %v1255 = vpack.c.b16 %v1235, %v1233
    %v1256 = vpack.c.b16 %v1236, %v1234
    %v1257 = vpack.c.b16 %v1239, %v1237
    %v1258 = vpack.c.b16 %v1240, %v1238
    %v1259 = vpack.c.b16 %v1243, %v1241
    %v1260 = vpack.c.b16 %v1244, %v1242
    %1277 = vmatprep.subr.bf16.mxu0 %v1246
    %1278 = vmatpush1.bf16.msra.mxu0 %v1245
    %1279 = vmatprep.subr.bf16.mxu0 %v1248
    %1280 = vmatpush1.bf16.msra.mxu0 %v1247
    %1281 = vmatprep.subr.bf16.mxu0 %v1250
    %1282 = vmatpush1.bf16.msra.mxu0 %v1249
    %1283 = vmatprep.subr.bf16.mxu0 %v1252
    %1284 = vmatpush1.bf16.msra.mxu0 %v1251
    %1285 = vmatprep.subr.bf16.mxu0 %v1254
    %1286 = vmatpush1.bf16.msra.mxu0 %v1253
    %1287 = vmatprep.subr.bf16.mxu0 %v1256
    %1288 = vmatpush1.bf16.msra.mxu0 %v1255
    %1289 = vmatprep.subr.bf16.mxu0 %v1258
    %1290 = vmatpush1.bf16.msra.mxu0 %v1257
    %1291 = vmatprep.subr.bf16.mxu0 %v1260
    %1292 = vmatpush1.bf16.msra.mxu0 %v1259
    %1293 = vmatprep.subr.bf16.mxu0 0
    %1294 = vmatpush1.bf16.msra.mxu0 0
    %1295 = vmatprep.subr.bf16.mxu0 0
    %1296 = vmatpush1.bf16.msra.mxu0 0
    %1297 = vmatprep.subr.bf16.mxu0 0
    %1298 = vmatpush1.bf16.msra.mxu0 0
    %1299 = vmatprep.subr.bf16.mxu0 0
    %1300 = vmatpush1.bf16.msra.mxu0 0
    %1301 = vmatprep.subr.bf16.mxu0 0
    %1302 = vmatpush1.bf16.msra.mxu0 0
    %1303 = vmatprep.subr.bf16.mxu0 0
    %1304 = vmatpush1.bf16.msra.mxu0 0
    %1305 = vmatprep.subr.bf16.mxu0 0
    %1306 = vmatpush1.bf16.msra.mxu0 0
    %1307 = vmatprep.subr.bf16.mxu0 0
    %1308 = vmatpush1.bf16.msra.mxu0 0
    %1309 = vmatprep.mubr.bf16.mxu0 0
    %1310 = vmatmul.mubr.bf16.gmra.mrb[0].mxu0 %v1180
    %v1311 = vpop.f32.mrb[0].mxu0
    %v1312 = vadd.f32 0.0, %v1311
    %v1313 = vpop.f32.mrb[0].mxu0
    %v1314 = vadd.f32 0.0, %v1313
    %v1315 = vpop.f32.mrb[0].mxu0
    %v1316 = vadd.f32 0.0, %v1315
    %v1317 = vpop.f32.mrb[0].mxu0
    %v1318 = vadd.f32 0.0, %v1317
    %1319 = vdwg.mxu0
    %s1320 = scalar_lea.vmem [#allocation4], 64
    %v1321 = vld [vmem:[%s1320] sm:$0xff]
    %v1322 = vld [vmem:[%s1320 + $0x8] sm:$0xff]
    %v1323 = vadd.f32 %v1321, %v1312
    %v1324 = vadd.f32 %v1322, %v1316
    %v1325 = vtanh.pop %v1323
    %v1326 = vtanh.pop %v1324
    %v1327 = vpack.c.bf16 %v1326, %v1325
    %v1328 = vld [vmem:[#allocation10] sm:$0xf]
    %v1329 = vld [vmem:[#allocation10 + $0x4] sm:$0xf]
    %v1330 = vld [vmem:[#allocation10 + $0x8] sm:$0xf]
    %v1331 = vld [vmem:[#allocation10 + $0xc] sm:$0xf]
    %v1332 = vld [vmem:[#allocation10 + $0x10] sm:$0xf]
    %v1333 = vld [vmem:[#allocation10 + $0x14] sm:$0xf]
    %v1334 = vld [vmem:[#allocation10 + $0x18] sm:$0xf]
    %v1335 = vld [vmem:[#allocation10 + $0x1c] sm:$0xf]
    %v1336 = vld [vmem:[#allocation10 + $0x20] sm:$0xf]
    %v1337 = vld [vmem:[#allocation10 + $0x24] sm:$0xf]
    %v1338 = vld [vmem:[#allocation10 + $0x28] sm:$0xf]
    %v1339 = vld [vmem:[#allocation10 + $0x2c] sm:$0xf]
    %v1340 = vld [vmem:[#allocation10 + $0x30] sm:$0xf]
    %v1341 = vld [vmem:[#allocation10 + $0x34] sm:$0xf]
    %v1342 = vld [vmem:[#allocation10 + $0x38] sm:$0xf]
    %v1343 = vld [vmem:[#allocation10 + $0x3c] sm:$0xf]
    %v1360 = vunpack.c.l.b16 %v1328
    %v1361 = vunpack.c.l.b16 %v1329
    %v1362 = vunpack.c.l.b16 %v1330
    %v1363 = vunpack.c.l.b16 %v1331
    %v1364 = vunpack.c.l.b16 %v1332
    %v1365 = vunpack.c.l.b16 %v1333
    %v1366 = vunpack.c.l.b16 %v1334
    %v1367 = vunpack.c.l.b16 %v1335
    %v1368 = vunpack.c.l.b16 %v1336
    %v1369 = vunpack.c.l.b16 %v1337
    %v1370 = vunpack.c.l.b16 %v1338
    %v1371 = vunpack.c.l.b16 %v1339
    %v1372 = vunpack.c.l.b16 %v1340
    %v1373 = vunpack.c.l.b16 %v1341
    %v1374 = vunpack.c.l.b16 %v1342
    %v1375 = vunpack.c.l.b16 %v1343
    %v1376 = vpack.c.b16 %v1361, %v1360
    %v1377 = vpack.c.b16 %v1363, %v1362
    %v1378 = vpack.c.b16 %v1365, %v1364
    %v1379 = vpack.c.b16 %v1367, %v1366
    %v1380 = vpack.c.b16 %v1369, %v1368
    %v1381 = vpack.c.b16 %v1371, %v1370
    %v1382 = vpack.c.b16 %v1373, %v1372
    %v1383 = vpack.c.b16 %v1375, %v1374
    %1392 = vmatprep.subr.bf16.mxu0 0
    %1393 = vmatpush1.bf16.msra.mxu0 %v1376
    %1394 = vmatprep.subr.bf16.mxu0 0
    %1395 = vmatpush1.bf16.msra.mxu0 %v1377
    %1396 = vmatprep.subr.bf16.mxu0 0
    %1397 = vmatpush1.bf16.msra.mxu0 %v1378
    %1398 = vmatprep.subr.bf16.mxu0 0
    %1399 = vmatpush1.bf16.msra.mxu0 %v1379
    %1400 = vmatprep.subr.bf16.mxu0 0
    %1401 = vmatpush1.bf16.msra.mxu0 %v1380
    %1402 = vmatprep.subr.bf16.mxu0 0
    %1403 = vmatpush1.bf16.msra.mxu0 %v1381
    %1404 = vmatprep.subr.bf16.mxu0 0
    %1405 = vmatpush1.bf16.msra.mxu0 %v1382
    %1406 = vmatprep.subr.bf16.mxu0 0
    %1407 = vmatpush1.bf16.msra.mxu0 %v1383
    %1408 = vmatprep.subr.bf16.mxu0 0
    %1409 = vmatpush1.bf16.msra.mxu0 0
    %1410 = vmatprep.subr.bf16.mxu0 0
    %1411 = vmatpush1.bf16.msra.mxu0 0
    %1412 = vmatprep.subr.bf16.mxu0 0
    %1413 = vmatpush1.bf16.msra.mxu0 0
    %1414 = vmatprep.subr.bf16.mxu0 0
    %1415 = vmatpush1.bf16.msra.mxu0 0
    %1416 = vmatprep.subr.bf16.mxu0 0
    %1417 = vmatpush1.bf16.msra.mxu0 0
    %1418 = vmatprep.subr.bf16.mxu0 0
    %1419 = vmatpush1.bf16.msra.mxu0 0
    %1420 = vmatprep.subr.bf16.mxu0 0
    %1421 = vmatpush1.bf16.msra.mxu0 0
    %1422 = vmatprep.subr.bf16.mxu0 0
    %1423 = vmatpush1.bf16.msra.mxu0 0
    %1424 = vmatprep.mubr.bf16.mxu0 0
    %1425 = vmatmul.mubr.bf16.gmra.mrb[0].mxu0 %v1327
    %v1426 = vpop.f32.mrb[0].mxu0
    %v1427 = vadd.f32 %v1314, %v1426
    %v1428 = vpop.f32.mrb[0].mxu0
    %v1429 = vpop.f32.mrb[0].mxu0
    %v1430 = vadd.f32 %v1318, %v1429
    %v1431 = vpop.f32.mrb[0].mxu0
    %1432 = vdwg.mxu0
    %v1433 = vld [vmem:[%s5] sm:$0x1]
    %v1435 = vlaneseq
    %v1436 = vshrl.u32 %v1435, 7
    %v1437 = vsub.s32 0, %v1436
    %v1438 = vrot.slane %v1433, %v1437
    %v1440 = vadd.f32 %v1427, %v1438
    %v1441 = vadd.f32 %v1430, %v1438
    %s1442 = sld [smem:[#allocation3 + %s1179]]
    %v1443 = vstv %s1442
    %vm1444 = vcmp.lt.s32.totalorder %v94, %v1443
    %v1445 = vsel %vm1444, %v1440, %v1174
    %v1446 = vsel %vm1444, %v1441, %v1175
    %s1447 = scalar_lea.vmem [#allocation12], 64
    %1448 = vst [vmem:[%s1447] sm:$0xff] %v1445
    %1449 = vst [vmem:[%s1447 + $0x8] sm:$0xff] %v1446
    %s1450 = sadd.s32 %s97, 5
    %v1451 = vpack.c.bf16 %v1446, %v1445
    %v1452 = vld [vmem:[#allocation9] sm:$0xff]
    %v1453 = vld [vmem:[#allocation9 + $0x8] sm:$0xff]
    %v1454 = vld [vmem:[#allocation9 + $0x10] sm:$0xff]
    %v1455 = vld [vmem:[#allocation9 + $0x18] sm:$0xff]
    %v1456 = vld [vmem:[#allocation9 + $0x20] sm:$0xff]
    %v1457 = vld [vmem:[#allocation9 + $0x28] sm:$0xff]
    %v1458 = vld [vmem:[#allocation9 + $0x30] sm:$0xff]
    %v1459 = vld [vmem:[#allocation9 + $0x38] sm:$0xff]
    %v1460 = vld [vmem:[#allocation9 + $0x40] sm:$0xff]
    %v1461 = vld [vmem:[#allocation9 + $0x48] sm:$0xff]
    %v1462 = vld [vmem:[#allocation9 + $0x50] sm:$0xff]
    %v1463 = vld [vmem:[#allocation9 + $0x58] sm:$0xff]
    %v1464 = vld [vmem:[#allocation9 + $0x60] sm:$0xff]
    %v1465 = vld [vmem:[#allocation9 + $0x68] sm:$0xff]
    %v1466 = vld [vmem:[#allocation9 + $0x70] sm:$0xff]
    %v1467 = vld [vmem:[#allocation9 + $0x78] sm:$0xff]
    %v1484 = vunpack.c.l.b16 %v1452
    %v1485 = vunpack.c.h.b16 %v1452
    %v1486 = vunpack.c.l.b16 %v1453
    %v1487 = vunpack.c.h.b16 %v1453
    %v1488 = vunpack.c.l.b16 %v1454
    %v1489 = vunpack.c.h.b16 %v1454
    %v1490 = vunpack.c.l.b16 %v1455
    %v1491 = vunpack.c.h.b16 %v1455
    %v1492 = vunpack.c.l.b16 %v1456
    %v1493 = vunpack.c.h.b16 %v1456
    %v1494 = vunpack.c.l.b16 %v1457
    %v1495 = vunpack.c.h.b16 %v1457
    %v1496 = vunpack.c.l.b16 %v1458
    %v1497 = vunpack.c.h.b16 %v1458
    %v1498 = vunpack.c.l.b16 %v1459
    %v1499 = vunpack.c.h.b16 %v1459
    %v1500 = vunpack.c.l.b16 %v1460
    %v1501 = vunpack.c.h.b16 %v1460
    %v1502 = vunpack.c.l.b16 %v1461
    %v1503 = vunpack.c.h.b16 %v1461
    %v1504 = vunpack.c.l.b16 %v1462
    %v1505 = vunpack.c.h.b16 %v1462
    %v1506 = vunpack.c.l.b16 %v1463
    %v1507 = vunpack.c.h.b16 %v1463
    %v1508 = vunpack.c.l.b16 %v1464
    %v1509 = vunpack.c.h.b16 %v1464
    %v1510 = vunpack.c.l.b16 %v1465
    %v1511 = vunpack.c.h.b16 %v1465
    %v1512 = vunpack.c.l.b16 %v1466
    %v1513 = vunpack.c.h.b16 %v1466
    %v1514 = vunpack.c.l.b16 %v1467
    %v1515 = vunpack.c.h.b16 %v1467
    %v1516 = vpack.c.b16 %v1486, %v1484
    %v1517 = vpack.c.b16 %v1487, %v1485
    %v1518 = vpack.c.b16 %v1490, %v1488
    %v1519 = vpack.c.b16 %v1491, %v1489
    %v1520 = vpack.c.b16 %v1494, %v1492
    %v1521 = vpack.c.b16 %v1495, %v1493
    %v1522 = vpack.c.b16 %v1498, %v1496
    %v1523 = vpack.c.b16 %v1499, %v1497
    %v1524 = vpack.c.b16 %v1502, %v1500
    %v1525 = vpack.c.b16 %v1503, %v1501
    %v1526 = vpack.c.b16 %v1506, %v1504
    %v1527 = vpack.c.b16 %v1507, %v1505
    %v1528 = vpack.c.b16 %v1510, %v1508
    %v1529 = vpack.c.b16 %v1511, %v1509
    %v1530 = vpack.c.b16 %v1514, %v1512
    %v1531 = vpack.c.b16 %v1515, %v1513
    %1548 = vmatprep.subr.bf16.mxu0 %v1517
    %1549 = vmatpush1.bf16.msra.mxu0 %v1516
    %1550 = vmatprep.subr.bf16.mxu0 %v1519
    %1551 = vmatpush1.bf16.msra.mxu0 %v1518
    %1552 = vmatprep.subr.bf16.mxu0 %v1521
    %1553 = vmatpush1.bf16.msra.mxu0 %v1520
    %1554 = vmatprep.subr.bf16.mxu0 %v1523
    %1555 = vmatpush1.bf16.msra.mxu0 %v1522
    %1556 = vmatprep.subr.bf16.mxu0 %v1525
    %1557 = vmatpush1.bf16.msra.mxu0 %v1524
    %1558 = vmatprep.subr.bf16.mxu0 %v1527
    %1559 = vmatpush1.bf16.msra.mxu0 %v1526
    %1560 = vmatprep.subr.bf16.mxu0 %v1529
    %1561 = vmatpush1.bf16.msra.mxu0 %v1528
    %1562 = vmatprep.subr.bf16.mxu0 %v1531
    %1563 = vmatpush1.bf16.msra.mxu0 %v1530
    %1564 = vmatprep.subr.bf16.mxu0 0
    %1565 = vmatpush1.bf16.msra.mxu0 0
    %1566 = vmatprep.subr.bf16.mxu0 0
    %1567 = vmatpush1.bf16.msra.mxu0 0
    %1568 = vmatprep.subr.bf16.mxu0 0
    %1569 = vmatpush1.bf16.msra.mxu0 0
    %1570 = vmatprep.subr.bf16.mxu0 0
    %1571 = vmatpush1.bf16.msra.mxu0 0
    %1572 = vmatprep.subr.bf16.mxu0 0
    %1573 = vmatpush1.bf16.msra.mxu0 0
    %1574 = vmatprep.subr.bf16.mxu0 0
    %1575 = vmatpush1.bf16.msra.mxu0 0
    %1576 = vmatprep.subr.bf16.mxu0 0
    %1577 = vmatpush1.bf16.msra.mxu0 0
    %1578 = vmatprep.subr.bf16.mxu0 0
    %1579 = vmatpush1.bf16.msra.mxu0 0
    %1580 = vmatprep.mubr.bf16.mxu0 0
    %1581 = vmatmul.mubr.bf16.gmra.mrb[0].mxu0 %v1451
    %v1582 = vpop.f32.mrb[0].mxu0
    %v1583 = vadd.f32 0.0, %v1582
    %v1584 = vpop.f32.mrb[0].mxu0
    %v1585 = vadd.f32 0.0, %v1584
    %v1586 = vpop.f32.mrb[0].mxu0
    %v1587 = vadd.f32 0.0, %v1586
    %v1588 = vpop.f32.mrb[0].mxu0
    %v1589 = vadd.f32 0.0, %v1588
    %1590 = vdwg.mxu0
    %s1591 = scalar_lea.vmem [#allocation4], 80
    %v1592 = vld [vmem:[%s1591] sm:$0xff]
    %v1593 = vld [vmem:[%s1591 + $0x8] sm:$0xff]
    %v1594 = vadd.f32 %v1592, %v1583
    %v1595 = vadd.f32 %v1593, %v1587
    %v1596 = vtanh.pop %v1594
    %v1597 = vtanh.pop %v1595
    %v1598 = vpack.c.bf16 %v1597, %v1596
    %v1599 = vld [vmem:[#allocation10] sm:$0xf]
    %v1600 = vld [vmem:[#allocation10 + $0x4] sm:$0xf]
    %v1601 = vld [vmem:[#allocation10 + $0x8] sm:$0xf]
    %v1602 = vld [vmem:[#allocation10 + $0xc] sm:$0xf]
    %v1603 = vld [vmem:[#allocation10 + $0x10] sm:$0xf]
    %v1604 = vld [vmem:[#allocation10 + $0x14] sm:$0xf]
    %v1605 = vld [vmem:[#allocation10 + $0x18] sm:$0xf]
    %v1606 = vld [vmem:[#allocation10 + $0x1c] sm:$0xf]
    %v1607 = vld [vmem:[#allocation10 + $0x20] sm:$0xf]
    %v1608 = vld [vmem:[#allocation10 + $0x24] sm:$0xf]
    %v1609 = vld [vmem:[#allocation10 + $0x28] sm:$0xf]
    %v1610 = vld [vmem:[#allocation10 + $0x2c] sm:$0xf]
    %v1611 = vld [vmem:[#allocation10 + $0x30] sm:$0xf]
    %v1612 = vld [vmem:[#allocation10 + $0x34] sm:$0xf]
    %v1613 = vld [vmem:[#allocation10 + $0x38] sm:$0xf]
    %v1614 = vld [vmem:[#allocation10 + $0x3c] sm:$0xf]
    %v1631 = vunpack.c.l.b16 %v1599
    %v1632 = vunpack.c.l.b16 %v1600
    %v1633 = vunpack.c.l.b16 %v1601
    %v1634 = vunpack.c.l.b16 %v1602
    %v1635 = vunpack.c.l.b16 %v1603
    %v1636 = vunpack.c.l.b16 %v1604
    %v1637 = vunpack.c.l.b16 %v1605
    %v1638 = vunpack.c.l.b16 %v1606
    %v1639 = vunpack.c.l.b16 %v1607
    %v1640 = vunpack.c.l.b16 %v1608
    %v1641 = vunpack.c.l.b16 %v1609
    %v1642 = vunpack.c.l.b16 %v1610
    %v1643 = vunpack.c.l.b16 %v1611
    %v1644 = vunpack.c.l.b16 %v1612
    %v1645 = vunpack.c.l.b16 %v1613
    %v1646 = vunpack.c.l.b16 %v1614
    %v1647 = vpack.c.b16 %v1632, %v1631
    %v1648 = vpack.c.b16 %v1634, %v1633
    %v1649 = vpack.c.b16 %v1636, %v1635
    %v1650 = vpack.c.b16 %v1638, %v1637
    %v1651 = vpack.c.b16 %v1640, %v1639
    %v1652 = vpack.c.b16 %v1642, %v1641
    %v1653 = vpack.c.b16 %v1644, %v1643
    %v1654 = vpack.c.b16 %v1646, %v1645
    %1663 = vmatprep.subr.bf16.mxu0 0
    %1664 = vmatpush1.bf16.msra.mxu0 %v1647
    %1665 = vmatprep.subr.bf16.mxu0 0
    %1666 = vmatpush1.bf16.msra.mxu0 %v1648
    %1667 = vmatprep.subr.bf16.mxu0 0
    %1668 = vmatpush1.bf16.msra.mxu0 %v1649
    %1669 = vmatprep.subr.bf16.mxu0 0
    %1670 = vmatpush1.bf16.msra.mxu0 %v1650
    %1671 = vmatprep.subr.bf16.mxu0 0
    %1672 = vmatpush1.bf16.msra.mxu0 %v1651
    %1673 = vmatprep.subr.bf16.mxu0 0
    %1674 = vmatpush1.bf16.msra.mxu0 %v1652
    %1675 = vmatprep.subr.bf16.mxu0 0
    %1676 = vmatpush1.bf16.msra.mxu0 %v1653
    %1677 = vmatprep.subr.bf16.mxu0 0
    %1678 = vmatpush1.bf16.msra.mxu0 %v1654
    %1679 = vmatprep.subr.bf16.mxu0 0
    %1680 = vmatpush1.bf16.msra.mxu0 0
    %1681 = vmatprep.subr.bf16.mxu0 0
    %1682 = vmatpush1.bf16.msra.mxu0 0
    %1683 = vmatprep.subr.bf16.mxu0 0
    %1684 = vmatpush1.bf16.msra.mxu0 0
    %1685 = vmatprep.subr.bf16.mxu0 0
    %1686 = vmatpush1.bf16.msra.mxu0 0
    %1687 = vmatprep.subr.bf16.mxu0 0
    %1688 = vmatpush1.bf16.msra.mxu0 0
    %1689 = vmatprep.subr.bf16.mxu0 0
    %1690 = vmatpush1.bf16.msra.mxu0 0
    %1691 = vmatprep.subr.bf16.mxu0 0
    %1692 = vmatpush1.bf16.msra.mxu0 0
    %1693 = vmatprep.subr.bf16.mxu0 0
    %1694 = vmatpush1.bf16.msra.mxu0 0
    %1695 = vmatprep.mubr.bf16.mxu0 0
    %1696 = vmatmul.mubr.bf16.gmra.mrb[0].mxu0 %v1598
    %v1697 = vpop.f32.mrb[0].mxu0
    %v1698 = vadd.f32 %v1585, %v1697
    %v1699 = vpop.f32.mrb[0].mxu0
    %v1700 = vpop.f32.mrb[0].mxu0
    %v1701 = vadd.f32 %v1589, %v1700
    %v1702 = vpop.f32.mrb[0].mxu0
    %1703 = vdwg.mxu0
    %v1704 = vld [vmem:[%s5] sm:$0x1]
    %v1706 = vlaneseq
    %v1707 = vshrl.u32 %v1706, 7
    %v1708 = vsub.s32 0, %v1707
    %v1709 = vrot.slane %v1704, %v1708
    %v1711 = vadd.f32 %v1698, %v1709
    %v1712 = vadd.f32 %v1701, %v1709
    %s1713 = sld [smem:[#allocation3 + %s1450]]
    %v1714 = vstv %s1713
    %vm1715 = vcmp.lt.s32.totalorder %v94, %v1714
    %v1716 = vsel %vm1715, %v1711, %v1445
    %v1717 = vsel %vm1715, %v1712, %v1446
    %s1718 = scalar_lea.vmem [#allocation12], 80
    %1719 = vst [vmem:[%s1718] sm:$0xff] %v1716
    %1720 = vst [vmem:[%s1718 + $0x8] sm:$0xff] %v1717
    %s1721 = sadd.s32 %s97, 6
    %v1722 = vpack.c.bf16 %v1717, %v1716
    %v1723 = vld [vmem:[#allocation9] sm:$0xff]
    %v1724 = vld [vmem:[#allocation9 + $0x8] sm:$0xff]
    %v1725 = vld [vmem:[#allocation9 + $0x10] sm:$0xff]
    %v1726 = vld [vmem:[#allocation9 + $0x18] sm:$0xff]
    %v1727 = vld [vmem:[#allocation9 + $0x20] sm:$0xff]
    %v1728 = vld [vmem:[#allocation9 + $0x28] sm:$0xff]
    %v1729 = vld [vmem:[#allocation9 + $0x30] sm:$0xff]
    %v1730 = vld [vmem:[#allocation9 + $0x38] sm:$0xff]
    %v1731 = vld [vmem:[#allocation9 + $0x40] sm:$0xff]
    %v1732 = vld [vmem:[#allocation9 + $0x48] sm:$0xff]
    %v1733 = vld [vmem:[#allocation9 + $0x50] sm:$0xff]
    %v1734 = vld [vmem:[#allocation9 + $0x58] sm:$0xff]
    %v1735 = vld [vmem:[#allocation9 + $0x60] sm:$0xff]
    %v1736 = vld [vmem:[#allocation9 + $0x68] sm:$0xff]
    %v1737 = vld [vmem:[#allocation9 + $0x70] sm:$0xff]
    %v1738 = vld [vmem:[#allocation9 + $0x78] sm:$0xff]
    %v1755 = vunpack.c.l.b16 %v1723
    %v1756 = vunpack.c.h.b16 %v1723
    %v1757 = vunpack.c.l.b16 %v1724
    %v1758 = vunpack.c.h.b16 %v1724
    %v1759 = vunpack.c.l.b16 %v1725
    %v1760 = vunpack.c.h.b16 %v1725
    %v1761 = vunpack.c.l.b16 %v1726
    %v1762 = vunpack.c.h.b16 %v1726
    %v1763 = vunpack.c.l.b16 %v1727
    %v1764 = vunpack.c.h.b16 %v1727
    %v1765 = vunpack.c.l.b16 %v1728
    %v1766 = vunpack.c.h.b16 %v1728
    %v1767 = vunpack.c.l.b16 %v1729
    %v1768 = vunpack.c.h.b16 %v1729
    %v1769 = vunpack.c.l.b16 %v1730
    %v1770 = vunpack.c.h.b16 %v1730
    %v1771 = vunpack.c.l.b16 %v1731
    %v1772 = vunpack.c.h.b16 %v1731
    %v1773 = vunpack.c.l.b16 %v1732
    %v1774 = vunpack.c.h.b16 %v1732
    %v1775 = vunpack.c.l.b16 %v1733
    %v1776 = vunpack.c.h.b16 %v1733
    %v1777 = vunpack.c.l.b16 %v1734
    %v1778 = vunpack.c.h.b16 %v1734
    %v1779 = vunpack.c.l.b16 %v1735
    %v1780 = vunpack.c.h.b16 %v1735
    %v1781 = vunpack.c.l.b16 %v1736
    %v1782 = vunpack.c.h.b16 %v1736
    %v1783 = vunpack.c.l.b16 %v1737
    %v1784 = vunpack.c.h.b16 %v1737
    %v1785 = vunpack.c.l.b16 %v1738
    %v1786 = vunpack.c.h.b16 %v1738
    %v1787 = vpack.c.b16 %v1757, %v1755
    %v1788 = vpack.c.b16 %v1758, %v1756
    %v1789 = vpack.c.b16 %v1761, %v1759
    %v1790 = vpack.c.b16 %v1762, %v1760
    %v1791 = vpack.c.b16 %v1765, %v1763
    %v1792 = vpack.c.b16 %v1766, %v1764
    %v1793 = vpack.c.b16 %v1769, %v1767
    %v1794 = vpack.c.b16 %v1770, %v1768
    %v1795 = vpack.c.b16 %v1773, %v1771
    %v1796 = vpack.c.b16 %v1774, %v1772
    %v1797 = vpack.c.b16 %v1777, %v1775
    %v1798 = vpack.c.b16 %v1778, %v1776
    %v1799 = vpack.c.b16 %v1781, %v1779
    %v1800 = vpack.c.b16 %v1782, %v1780
    %v1801 = vpack.c.b16 %v1785, %v1783
    %v1802 = vpack.c.b16 %v1786, %v1784
    %1819 = vmatprep.subr.bf16.mxu0 %v1788
    %1820 = vmatpush1.bf16.msra.mxu0 %v1787
    %1821 = vmatprep.subr.bf16.mxu0 %v1790
    %1822 = vmatpush1.bf16.msra.mxu0 %v1789
    %1823 = vmatprep.subr.bf16.mxu0 %v1792
    %1824 = vmatpush1.bf16.msra.mxu0 %v1791
    %1825 = vmatprep.subr.bf16.mxu0 %v1794
    %1826 = vmatpush1.bf16.msra.mxu0 %v1793
    %1827 = vmatprep.subr.bf16.mxu0 %v1796
    %1828 = vmatpush1.bf16.msra.mxu0 %v1795
    %1829 = vmatprep.subr.bf16.mxu0 %v1798
    %1830 = vmatpush1.bf16.msra.mxu0 %v1797
    %1831 = vmatprep.subr.bf16.mxu0 %v1800
    %1832 = vmatpush1.bf16.msra.mxu0 %v1799
    %1833 = vmatprep.subr.bf16.mxu0 %v1802
    %1834 = vmatpush1.bf16.msra.mxu0 %v1801
    %1835 = vmatprep.subr.bf16.mxu0 0
    %1836 = vmatpush1.bf16.msra.mxu0 0
    %1837 = vmatprep.subr.bf16.mxu0 0
    %1838 = vmatpush1.bf16.msra.mxu0 0
    %1839 = vmatprep.subr.bf16.mxu0 0
    %1840 = vmatpush1.bf16.msra.mxu0 0
    %1841 = vmatprep.subr.bf16.mxu0 0
    %1842 = vmatpush1.bf16.msra.mxu0 0
    %1843 = vmatprep.subr.bf16.mxu0 0
    %1844 = vmatpush1.bf16.msra.mxu0 0
    %1845 = vmatprep.subr.bf16.mxu0 0
    %1846 = vmatpush1.bf16.msra.mxu0 0
    %1847 = vmatprep.subr.bf16.mxu0 0
    %1848 = vmatpush1.bf16.msra.mxu0 0
    %1849 = vmatprep.subr.bf16.mxu0 0
    %1850 = vmatpush1.bf16.msra.mxu0 0
    %1851 = vmatprep.mubr.bf16.mxu0 0
    %1852 = vmatmul.mubr.bf16.gmra.mrb[0].mxu0 %v1722
    %v1853 = vpop.f32.mrb[0].mxu0
    %v1854 = vadd.f32 0.0, %v1853
    %v1855 = vpop.f32.mrb[0].mxu0
    %v1856 = vadd.f32 0.0, %v1855
    %v1857 = vpop.f32.mrb[0].mxu0
    %v1858 = vadd.f32 0.0, %v1857
    %v1859 = vpop.f32.mrb[0].mxu0
    %v1860 = vadd.f32 0.0, %v1859
    %1861 = vdwg.mxu0
    %s1862 = scalar_lea.vmem [#allocation4], 96
    %v1863 = vld [vmem:[%s1862] sm:$0xff]
    %v1864 = vld [vmem:[%s1862 + $0x8] sm:$0xff]
    %v1865 = vadd.f32 %v1863, %v1854
    %v1866 = vadd.f32 %v1864, %v1858
    %v1867 = vtanh.pop %v1865
    %v1868 = vtanh.pop %v1866
    %v1869 = vpack.c.bf16 %v1868, %v1867
    %v1870 = vld [vmem:[#allocation10] sm:$0xf]
    %v1871 = vld [vmem:[#allocation10 + $0x4] sm:$0xf]
    %v1872 = vld [vmem:[#allocation10 + $0x8] sm:$0xf]
    %v1873 = vld [vmem:[#allocation10 + $0xc] sm:$0xf]
    %v1874 = vld [vmem:[#allocation10 + $0x10] sm:$0xf]
    %v1875 = vld [vmem:[#allocation10 + $0x14] sm:$0xf]
    %v1876 = vld [vmem:[#allocation10 + $0x18] sm:$0xf]
    %v1877 = vld [vmem:[#allocation10 + $0x1c] sm:$0xf]
    %v1878 = vld [vmem:[#allocation10 + $0x20] sm:$0xf]
    %v1879 = vld [vmem:[#allocation10 + $0x24] sm:$0xf]
    %v1880 = vld [vmem:[#allocation10 + $0x28] sm:$0xf]
    %v1881 = vld [vmem:[#allocation10 + $0x2c] sm:$0xf]
    %v1882 = vld [vmem:[#allocation10 + $0x30] sm:$0xf]
    %v1883 = vld [vmem:[#allocation10 + $0x34] sm:$0xf]
    %v1884 = vld [vmem:[#allocation10 + $0x38] sm:$0xf]
    %v1885 = vld [vmem:[#allocation10 + $0x3c] sm:$0xf]
    %v1902 = vunpack.c.l.b16 %v1870
    %v1903 = vunpack.c.l.b16 %v1871
    %v1904 = vunpack.c.l.b16 %v1872
    %v1905 = vunpack.c.l.b16 %v1873
    %v1906 = vunpack.c.l.b16 %v1874
    %v1907 = vunpack.c.l.b16 %v1875
    %v1908 = vunpack.c.l.b16 %v1876
    %v1909 = vunpack.c.l.b16 %v1877
    %v1910 = vunpack.c.l.b16 %v1878
    %v1911 = vunpack.c.l.b16 %v1879
    %v1912 = vunpack.c.l.b16 %v1880
    %v1913 = vunpack.c.l.b16 %v1881
    %v1914 = vunpack.c.l.b16 %v1882
    %v1915 = vunpack.c.l.b16 %v1883
    %v1916 = vunpack.c.l.b16 %v1884
    %v1917 = vunpack.c.l.b16 %v1885
    %v1918 = vpack.c.b16 %v1903, %v1902
    %v1919 = vpack.c.b16 %v1905, %v1904
    %v1920 = vpack.c.b16 %v1907, %v1906
    %v1921 = vpack.c.b16 %v1909, %v1908
    %v1922 = vpack.c.b16 %v1911, %v1910
    %v1923 = vpack.c.b16 %v1913, %v1912
    %v1924 = vpack.c.b16 %v1915, %v1914
    %v1925 = vpack.c.b16 %v1917, %v1916
    %1934 = vmatprep.subr.bf16.mxu0 0
    %1935 = vmatpush1.bf16.msra.mxu0 %v1918
    %1936 = vmatprep.subr.bf16.mxu0 0
    %1937 = vmatpush1.bf16.msra.mxu0 %v1919
    %1938 = vmatprep.subr.bf16.mxu0 0
    %1939 = vmatpush1.bf16.msra.mxu0 %v1920
    %1940 = vmatprep.subr.bf16.mxu0 0
    %1941 = vmatpush1.bf16.msra.mxu0 %v1921
    %1942 = vmatprep.subr.bf16.mxu0 0
    %1943 = vmatpush1.bf16.msra.mxu0 %v1922
    %1944 = vmatprep.subr.bf16.mxu0 0
    %1945 = vmatpush1.bf16.msra.mxu0 %v1923
    %1946 = vmatprep.subr.bf16.mxu0 0
    %1947 = vmatpush1.bf16.msra.mxu0 %v1924
    %1948 = vmatprep.subr.bf16.mxu0 0
    %1949 = vmatpush1.bf16.msra.mxu0 %v1925
    %1950 = vmatprep.subr.bf16.mxu0 0
    %1951 = vmatpush1.bf16.msra.mxu0 0
    %1952 = vmatprep.subr.bf16.mxu0 0
    %1953 = vmatpush1.bf16.msra.mxu0 0
    %1954 = vmatprep.subr.bf16.mxu0 0
    %1955 = vmatpush1.bf16.msra.mxu0 0
    %1956 = vmatprep.subr.bf16.mxu0 0
    %1957 = vmatpush1.bf16.msra.mxu0 0
    %1958 = vmatprep.subr.bf16.mxu0 0
    %1959 = vmatpush1.bf16.msra.mxu0 0
    %1960 = vmatprep.subr.bf16.mxu0 0
    %1961 = vmatpush1.bf16.msra.mxu0 0
    %1962 = vmatprep.subr.bf16.mxu0 0
    %1963 = vmatpush1.bf16.msra.mxu0 0
    %1964 = vmatprep.subr.bf16.mxu0 0
    %1965 = vmatpush1.bf16.msra.mxu0 0
    %1966 = vmatprep.mubr.bf16.mxu0 0
    %1967 = vmatmul.mubr.bf16.gmra.mrb[0].mxu0 %v1869
    %v1968 = vpop.f32.mrb[0].mxu0
    %v1969 = vadd.f32 %v1856, %v1968
    %v1970 = vpop.f32.mrb[0].mxu0
    %v1971 = vpop.f32.mrb[0].mxu0
    %v1972 = vadd.f32 %v1860, %v1971
    %v1973 = vpop.f32.mrb[0].mxu0
    %1974 = vdwg.mxu0
    %v1975 = vld [vmem:[%s5] sm:$0x1]
    %v1977 = vlaneseq
    %v1978 = vshrl.u32 %v1977, 7
    %v1979 = vsub.s32 0, %v1978
    %v1980 = vrot.slane %v1975, %v1979
    %v1982 = vadd.f32 %v1969, %v1980
    %v1983 = vadd.f32 %v1972, %v1980
    %s1984 = sld [smem:[#allocation3 + %s1721]]
    %v1985 = vstv %s1984
    %vm1986 = vcmp.lt.s32.totalorder %v94, %v1985
    %v1987 = vsel %vm1986, %v1982, %v1716
    %v1988 = vsel %vm1986, %v1983, %v1717
    %s1989 = scalar_lea.vmem [#allocation12], 96
    %1990 = vst [vmem:[%s1989] sm:$0xff] %v1987
    %1991 = vst [vmem:[%s1989 + $0x8] sm:$0xff] %v1988
    %s1992 = sadd.s32 %s97, 7
    %v1993 = vpack.c.bf16 %v1988, %v1987
    %v1994 = vld [vmem:[#allocation9] sm:$0xff]
    %v1995 = vld [vmem:[#allocation9 + $0x8] sm:$0xff]
    %v1996 = vld [vmem:[#allocation9 + $0x10] sm:$0xff]
    %v1997 = vld [vmem:[#allocation9 + $0x18] sm:$0xff]
    %v1998 = vld [vmem:[#allocation9 + $0x20] sm:$0xff]
    %v1999 = vld [vmem:[#allocation9 + $0x28] sm:$0xff]
    %v2000 = vld [vmem:[#allocation9 + $0x30] sm:$0xff]
    %v2001 = vld [vmem:[#allocation9 + $0x38] sm:$0xff]
    %v2002 = vld [vmem:[#allocation9 + $0x40] sm:$0xff]
    %v2003 = vld [vmem:[#allocation9 + $0x48] sm:$0xff]
    %v2004 = vld [vmem:[#allocation9 + $0x50] sm:$0xff]
    %v2005 = vld [vmem:[#allocation9 + $0x58] sm:$0xff]
    %v2006 = vld [vmem:[#allocation9 + $0x60] sm:$0xff]
    %v2007 = vld [vmem:[#allocation9 + $0x68] sm:$0xff]
    %v2008 = vld [vmem:[#allocation9 + $0x70] sm:$0xff]
    %v2009 = vld [vmem:[#allocation9 + $0x78] sm:$0xff]
    %v2026 = vunpack.c.l.b16 %v1994
    %v2027 = vunpack.c.h.b16 %v1994
    %v2028 = vunpack.c.l.b16 %v1995
    %v2029 = vunpack.c.h.b16 %v1995
    %v2030 = vunpack.c.l.b16 %v1996
    %v2031 = vunpack.c.h.b16 %v1996
    %v2032 = vunpack.c.l.b16 %v1997
    %v2033 = vunpack.c.h.b16 %v1997
    %v2034 = vunpack.c.l.b16 %v1998
    %v2035 = vunpack.c.h.b16 %v1998
    %v2036 = vunpack.c.l.b16 %v1999
    %v2037 = vunpack.c.h.b16 %v1999
    %v2038 = vunpack.c.l.b16 %v2000
    %v2039 = vunpack.c.h.b16 %v2000
    %v2040 = vunpack.c.l.b16 %v2001
    %v2041 = vunpack.c.h.b16 %v2001
    %v2042 = vunpack.c.l.b16 %v2002
    %v2043 = vunpack.c.h.b16 %v2002
    %v2044 = vunpack.c.l.b16 %v2003
    %v2045 = vunpack.c.h.b16 %v2003
    %v2046 = vunpack.c.l.b16 %v2004
    %v2047 = vunpack.c.h.b16 %v2004
    %v2048 = vunpack.c.l.b16 %v2005
    %v2049 = vunpack.c.h.b16 %v2005
    %v2050 = vunpack.c.l.b16 %v2006
    %v2051 = vunpack.c.h.b16 %v2006
    %v2052 = vunpack.c.l.b16 %v2007
    %v2053 = vunpack.c.h.b16 %v2007
    %v2054 = vunpack.c.l.b16 %v2008
    %v2055 = vunpack.c.h.b16 %v2008
    %v2056 = vunpack.c.l.b16 %v2009
    %v2057 = vunpack.c.h.b16 %v2009
    %v2058 = vpack.c.b16 %v2028, %v2026
    %v2059 = vpack.c.b16 %v2029, %v2027
    %v2060 = vpack.c.b16 %v2032, %v2030
    %v2061 = vpack.c.b16 %v2033, %v2031
    %v2062 = vpack.c.b16 %v2036, %v2034
    %v2063 = vpack.c.b16 %v2037, %v2035
    %v2064 = vpack.c.b16 %v2040, %v2038
    %v2065 = vpack.c.b16 %v2041, %v2039
    %v2066 = vpack.c.b16 %v2044, %v2042
    %v2067 = vpack.c.b16 %v2045, %v2043
    %v2068 = vpack.c.b16 %v2048, %v2046
    %v2069 = vpack.c.b16 %v2049, %v2047
    %v2070 = vpack.c.b16 %v2052, %v2050
    %v2071 = vpack.c.b16 %v2053, %v2051
    %v2072 = vpack.c.b16 %v2056, %v2054
    %v2073 = vpack.c.b16 %v2057, %v2055
    %2090 = vmatprep.subr.bf16.mxu0 %v2059
    %2091 = vmatpush1.bf16.msra.mxu0 %v2058
    %2092 = vmatprep.subr.bf16.mxu0 %v2061
    %2093 = vmatpush1.bf16.msra.mxu0 %v2060
    %2094 = vmatprep.subr.bf16.mxu0 %v2063
    %2095 = vmatpush1.bf16.msra.mxu0 %v2062
    %2096 = vmatprep.subr.bf16.mxu0 %v2065
    %2097 = vmatpush1.bf16.msra.mxu0 %v2064
    %2098 = vmatprep.subr.bf16.mxu0 %v2067
    %2099 = vmatpush1.bf16.msra.mxu0 %v2066
    %2100 = vmatprep.subr.bf16.mxu0 %v2069
    %2101 = vmatpush1.bf16.msra.mxu0 %v2068
    %2102 = vmatprep.subr.bf16.mxu0 %v2071
    %2103 = vmatpush1.bf16.msra.mxu0 %v2070
    %2104 = vmatprep.subr.bf16.mxu0 %v2073
    %2105 = vmatpush1.bf16.msra.mxu0 %v2072
    %2106 = vmatprep.subr.bf16.mxu0 0
    %2107 = vmatpush1.bf16.msra.mxu0 0
    %2108 = vmatprep.subr.bf16.mxu0 0
    %2109 = vmatpush1.bf16.msra.mxu0 0
    %2110 = vmatprep.subr.bf16.mxu0 0
    %2111 = vmatpush1.bf16.msra.mxu0 0
    %2112 = vmatprep.subr.bf16.mxu0 0
    %2113 = vmatpush1.bf16.msra.mxu0 0
    %2114 = vmatprep.subr.bf16.mxu0 0
    %2115 = vmatpush1.bf16.msra.mxu0 0
    %2116 = vmatprep.subr.bf16.mxu0 0
    %2117 = vmatpush1.bf16.msra.mxu0 0
    %2118 = vmatprep.subr.bf16.mxu0 0
    %2119 = vmatpush1.bf16.msra.mxu0 0
    %2120 = vmatprep.subr.bf16.mxu0 0
    %2121 = vmatpush1.bf16.msra.mxu0 0
    %2122 = vmatprep.mubr.bf16.mxu0 0
    %2123 = vmatmul.mubr.bf16.gmra.mrb[0].mxu0 %v1993
    %v2124 = vpop.f32.mrb[0].mxu0
    %v2125 = vadd.f32 0.0, %v2124
    %v2126 = vpop.f32.mrb[0].mxu0
    %v2127 = vadd.f32 0.0, %v2126
    %v2128 = vpop.f32.mrb[0].mxu0
    %v2129 = vadd.f32 0.0, %v2128
    %v2130 = vpop.f32.mrb[0].mxu0
    %v2131 = vadd.f32 0.0, %v2130
    %2132 = vdwg.mxu0
    %s2133 = scalar_lea.vmem [#allocation4], 112
    %v2134 = vld [vmem:[%s2133] sm:$0xff]
    %v2135 = vld [vmem:[%s2133 + $0x8] sm:$0xff]
    %v2136 = vadd.f32 %v2134, %v2125
    %v2137 = vadd.f32 %v2135, %v2129
    %v2138 = vtanh.pop %v2136
    %v2139 = vtanh.pop %v2137
    %v2140 = vpack.c.bf16 %v2139, %v2138
    %v2141 = vld [vmem:[#allocation10] sm:$0xf]
    %v2142 = vld [vmem:[#allocation10 + $0x4] sm:$0xf]
    %v2143 = vld [vmem:[#allocation10 + $0x8] sm:$0xf]
    %v2144 = vld [vmem:[#allocation10 + $0xc] sm:$0xf]
    %v2145 = vld [vmem:[#allocation10 + $0x10] sm:$0xf]
    %v2146 = vld [vmem:[#allocation10 + $0x14] sm:$0xf]
    %v2147 = vld [vmem:[#allocation10 + $0x18] sm:$0xf]
    %v2148 = vld [vmem:[#allocation10 + $0x1c] sm:$0xf]
    %v2149 = vld [vmem:[#allocation10 + $0x20] sm:$0xf]
    %v2150 = vld [vmem:[#allocation10 + $0x24] sm:$0xf]
    %v2151 = vld [vmem:[#allocation10 + $0x28] sm:$0xf]
    %v2152 = vld [vmem:[#allocation10 + $0x2c] sm:$0xf]
    %v2153 = vld [vmem:[#allocation10 + $0x30] sm:$0xf]
    %v2154 = vld [vmem:[#allocation10 + $0x34] sm:$0xf]
    %v2155 = vld [vmem:[#allocation10 + $0x38] sm:$0xf]
    %v2156 = vld [vmem:[#allocation10 + $0x3c] sm:$0xf]
    %v2173 = vunpack.c.l.b16 %v2141
    %v2174 = vunpack.c.l.b16 %v2142
    %v2175 = vunpack.c.l.b16 %v2143
    %v2176 = vunpack.c.l.b16 %v2144
    %v2177 = vunpack.c.l.b16 %v2145
    %v2178 = vunpack.c.l.b16 %v2146
    %v2179 = vunpack.c.l.b16 %v2147
    %v2180 = vunpack.c.l.b16 %v2148
    %v2181 = vunpack.c.l.b16 %v2149
    %v2182 = vunpack.c.l.b16 %v2150
    %v2183 = vunpack.c.l.b16 %v2151
    %v2184 = vunpack.c.l.b16 %v2152
    %v2185 = vunpack.c.l.b16 %v2153
    %v2186 = vunpack.c.l.b16 %v2154
    %v2187 = vunpack.c.l.b16 %v2155
    %v2188 = vunpack.c.l.b16 %v2156
    %v2189 = vpack.c.b16 %v2174, %v2173
    %v2190 = vpack.c.b16 %v2176, %v2175
    %v2191 = vpack.c.b16 %v2178, %v2177
    %v2192 = vpack.c.b16 %v2180, %v2179
    %v2193 = vpack.c.b16 %v2182, %v2181
    %v2194 = vpack.c.b16 %v2184, %v2183
    %v2195 = vpack.c.b16 %v2186, %v2185
    %v2196 = vpack.c.b16 %v2188, %v2187
    %2205 = vmatprep.subr.bf16.mxu0 0
    %2206 = vmatpush1.bf16.msra.mxu0 %v2189
    %2207 = vmatprep.subr.bf16.mxu0 0
    %2208 = vmatpush1.bf16.msra.mxu0 %v2190
    %2209 = vmatprep.subr.bf16.mxu0 0
    %2210 = vmatpush1.bf16.msra.mxu0 %v2191
    %2211 = vmatprep.subr.bf16.mxu0 0
    %2212 = vmatpush1.bf16.msra.mxu0 %v2192
    %2213 = vmatprep.subr.bf16.mxu0 0
    %2214 = vmatpush1.bf16.msra.mxu0 %v2193
    %2215 = vmatprep.subr.bf16.mxu0 0
    %2216 = vmatpush1.bf16.msra.mxu0 %v2194
    %2217 = vmatprep.subr.bf16.mxu0 0
    %2218 = vmatpush1.bf16.msra.mxu0 %v2195
    %2219 = vmatprep.subr.bf16.mxu0 0
    %2220 = vmatpush1.bf16.msra.mxu0 %v2196
    %2221 = vmatprep.subr.bf16.mxu0 0
    %2222 = vmatpush1.bf16.msra.mxu0 0
    %2223 = vmatprep.subr.bf16.mxu0 0
    %2224 = vmatpush1.bf16.msra.mxu0 0
    %2225 = vmatprep.subr.bf16.mxu0 0
    %2226 = vmatpush1.bf16.msra.mxu0 0
    %2227 = vmatprep.subr.bf16.mxu0 0
    %2228 = vmatpush1.bf16.msra.mxu0 0
    %2229 = vmatprep.subr.bf16.mxu0 0
    %2230 = vmatpush1.bf16.msra.mxu0 0
    %2231 = vmatprep.subr.bf16.mxu0 0
    %2232 = vmatpush1.bf16.msra.mxu0 0
    %2233 = vmatprep.subr.bf16.mxu0 0
    %2234 = vmatpush1.bf16.msra.mxu0 0
    %2235 = vmatprep.subr.bf16.mxu0 0
    %2236 = vmatpush1.bf16.msra.mxu0 0
    %2237 = vmatprep.mubr.bf16.mxu0 0
    %2238 = vmatmul.mubr.bf16.gmra.mrb[0].mxu0 %v2140
    %v2239 = vpop.f32.mrb[0].mxu0
    %v2240 = vadd.f32 %v2127, %v2239
    %v2241 = vpop.f32.mrb[0].mxu0
    %v2242 = vpop.f32.mrb[0].mxu0
    %v2243 = vadd.f32 %v2131, %v2242
    %v2244 = vpop.f32.mrb[0].mxu0
    %2245 = vdwg.mxu0
    %v2246 = vld [vmem:[%s5] sm:$0x1]
    %v2248 = vlaneseq
    %v2249 = vshrl.u32 %v2248, 7
    %v2250 = vsub.s32 0, %v2249
    %v2251 = vrot.slane %v2246, %v2250
    %v2253 = vadd.f32 %v2240, %v2251
    %v2254 = vadd.f32 %v2243, %v2251
    %s2255 = sld [smem:[#allocation3 + %s1992]]
    %v2256 = vstv %s2255
    %vm2257 = vcmp.lt.s32.totalorder %v94, %v2256
    %v2258 = vsel %vm2257, %v2253, %v1987
    %v2259 = vsel %vm2257, %v2254, %v1988
    %s2260 = scalar_lea.vmem [#allocation12], 112
    %2261 = vst [vmem:[%s2260] sm:$0xff] %v2258
    %2262 = vst [vmem:[%s2260 + $0x8] sm:$0xff] %v2259
    %2263 = vst [vmem:[#allocation13] sm:$0xff] %v2258
    %2264 = vst [vmem:[#allocation13 + $0x8] sm:$0xff] %v2259
    // Predicated region
    $region42: #{tpu_custom_call.1} parent=1 // pred_check
      _
    $region43: #{tpu_custom_call.1} parent=1 // pred_check_branch
      %2266 = sbr.rel (0) target = $region45
    $region44: #{tpu_custom_call.1} parent=1 // pred_region
      %s2268 = ssub.s32 2048, 2048
      %2269 = vsyncadd [#allocation6], %s2268
      %s2270 = sshll.u32 [#allocation12], 4
      %s2271 = int_to_ptr.vmem [resolvable:$true] %s2270
      %2276 = dma.vmem_to_hbm [thread:$0]  %s2271, 2048, %s6, [#allocation6], 128, 128, 8
    $region45: #{tpu_custom_call.1} parent=1 // pred_fallthru
      _
    // Predicated region
    $region46: #{tpu_custom_call.1} parent=1 // pred_check
      _
    $region47: #{tpu_custom_call.1} parent=1 // pred_check_branch
      %2278 = sbr.rel (0) target = $region49
    $region48: #{tpu_custom_call.1} parent=1 // pred_region
      %s2280 = ssub.s32 256, 256
      %2281 = vsyncadd [#allocation14], %s2280
      %s2282 = sshll.u32 [#allocation13], 4
      %s2283 = int_to_ptr.vmem [resolvable:$true] %s2282
      %2288 = dma.vmem_to_hbm [thread:$0]  %s2283, 256, %s7, [#allocation14], 128, 128, 8
    $region49: #{tpu_custom_call.1} parent=1 // pred_fallthru
      _
    // Predicated region
    $region50: #{tpu_custom_call.1} parent=1 // pred_check
      _
    $region51: #{tpu_custom_call.1} parent=1 // pred_check_branch
      %2290 = sbr.rel (0) target = $region53
    $region52: #{tpu_custom_call.1} parent=1 // pred_region
      %2291 = dma.done [#allocation6], 2048
    $region53: #{tpu_custom_call.1} parent=1 // pred_fallthru
      _
    // Predicated region
    $region54: #{tpu_custom_call.1} parent=1 // pred_check
      _
    $region55: #{tpu_custom_call.1} parent=1 // pred_check_branch
      %2293 = sbr.rel (0) target = $region57
    $region56: #{tpu_custom_call.1} parent=1 // pred_region
      %2294 = dma.done [#allocation14], 256
    $region57: #{tpu_custom_call.1} parent=1 // pred_fallthru
      _
    %2295 = vsyncpa [#allocation5], 1
    %2296 = vsyncpa [#allocation8], 1
    %2297 = vsyncpa [#allocation11], 1
    %2298 = vsyncpa [#allocation6], 1
    %2299 = vsyncpa [#allocation14], 1

</llo_original>
